<compile_context>
chip_gen: v7x
topology: tpu7x:2x2x1
jax: 0.10.0
libtpu: 0.0.40
codegen_flags: <defaults>
</compile_context>

<pallas_src>
import math
import functools

import jax
import jax.numpy as jnp
from jax.experimental import pallas as pl
from jax.experimental.pallas import tpu as pltpu


# ----------------------------- kernel body ---------------------------------


def _sdpa_kernel(q_ref, k_ref, v_ref, out_ref, attn_ref, *, scale: float):
    # q_ref: (Hb, TQ, d)   k_ref/v_ref: (Hb, Sk, d)
    # out_ref: (Hb, TQ, d) attn_ref: (Hb, TQ, Sk)
    q = q_ref[...]
    k = k_ref[...]

    # scores = (Q @ K^T) * 1/sqrt(d_k): operands in native dtype (bf16 MXU mode
    # when inputs are bf16), f32 accumulation; scale applied on the f32 scores.
    s = jnp.einsum(
        "hqd,hkd->hqk", q, k, preferred_element_type=jnp.float32
    ) * scale                                            # (Hb, TQ, Sk) f32

    # Numerically-stable softmax, all in f32. The reciprocal is over a
    # (Hb, TQ, 1) vector, so the exact form is essentially free and keeps the
    # returned attention_weights accurate.
    m = jnp.max(s, axis=-1, keepdims=True)
    p = jnp.exp(s - m)
    denom = jnp.sum(p, axis=-1, keepdims=True)
    attn = p * pl.reciprocal(denom)                      # exact (approx=False)

    # P @ V: cast probabilities to V's dtype (bf16 MXU mode if V is bf16),
    # accumulate in f32.
    out = jnp.einsum(
        "hqk,hkd->hqd", attn.astype(v_ref.dtype), v_ref[...],
        preferred_element_type=jnp.float32,
    )

    out_ref[...] = out.astype(out_ref.dtype)
    attn_ref[...] = attn.astype(attn_ref.dtype)


# --------------------------- tiling heuristics ------------------------------

_VMEM_BUDGET = 52 * 1024 * 1024   # keep well under v7x's 64 MiB physical VMEM
_VMEM_LIMIT = 60 * 1024 * 1024    # scoped limit (> 16/32 MiB defaults, < 64 MiB)


def _largest_divisor_leq(n: int, cap: int, multiple: int = 1) -> int:
    """Largest divisor of `n` that is <= cap and a multiple of `multiple` (0 if none)."""
    cap = max(1, min(cap, n))
    for t in range(cap, 0, -1):
        if n % t == 0 and t % multiple == 0:
            return t
    return 0


def _choose_query_tile(sq: int, block_q: int) -> int:
    if sq <= block_q:
        return sq
    t = _largest_divisor_leq(sq, block_q, multiple=8)
    if t:
        return t
    # TODO(synk): pad/mask a ragged last query tile instead of full-extent fallback.
    return sq


def _choose_head_block(bh: int, d: int, sk: int) -> int:
    if d >= 128 and sk >= 128:
        return 1
    # Small head_dim / short keys: batch heads per grid step to amortize the
    # fixed per-step overhead and merge K/V DMAs.
    target = max(1, 128 // max(d, 8))
    target = min(target, 8, bh)
    return max(_largest_divisor_leq(bh, target), 1)


def _vmem_bytes(h_blk, tq, sk, d, in_bytes, out_bytes, kv_bufs):
    q_b = 2 * h_blk * tq * d * in_bytes                 # double-buffered Q tile
    kv_b = 2 * kv_bufs * h_blk * sk * d * in_bytes      # K and V
    o_b = 2 * h_blk * tq * d * out_bytes                # output tile
    a_b = 2 * h_blk * tq * sk * out_bytes               # attn tile
    scratch = 3 * h_blk * tq * sk * 4                   # f32 scores/exp/attn temps
    return q_b + kv_b + o_b + a_b + scratch


# ------------------------------- wrapper ------------------------------------


def scaled_dot_product_attention_multihead(query, key, value, mask=None, *,
                                           block_q: int = 128):
    """query: (..., Sq, d), key/value: (..., Sk, d).

    Returns (output, attention_weights) with shapes (..., Sq, d) and
    (..., Sq, Sk), matching the PyTorch module's forward with mask=None.
    """
    # TODO(synk): the padding-mask path (mask is not None) is not implemented.
    assert mask is None, "mask path not implemented in the Pallas kernel"

    *lead_q, sq, d = query.shape
    *lead_k, sk, dk = key.shape
    assert tuple(lead_q) == tuple(lead_k) and d == dk, \
        "leading/embedding dims must match"

    bh = math.prod(lead_q) if lead_q else 1
    qf = query.reshape(bh, sq, d)
    kf = key.reshape(bh, sk, d)
    vf = value.reshape(bh, sk, d)

    in_bytes = query.dtype.itemsize
    out_bytes = query.dtype.itemsize

    # Initial tiling choices, then shrink until the VMEM budget is met.
    tq = _choose_query_tile(sq, block_q)
    h_blk = _choose_head_block(bh, d, sk)
    kv_bufs = 2
    while _vmem_bytes(h_blk, tq, sk, d, in_bytes, out_bytes, kv_bufs) > _VMEM_BUDGET:
        nq = sq // tq
        if kv_bufs == 2 and nq > 1:
            # K/V block index is constant across the query-tile axis, so a
            # single buffer only costs a small bubble once per head block.
            kv_bufs = 1
            continue
        if h_blk > 1:
            h_blk = _largest_divisor_leq(bh, max(1, h_blk // 2)) or 1
            continue
        new_tq = _largest_divisor_leq(sq, max(8, tq // 2), multiple=8)
        if new_tq and new_tq < tq:
            tq = new_tq
            continue
        break  # best effort; pathological shapes accepted as-is

    nq_tiles = sq // tq
    grid = (bh // h_blk, nq_tiles)

    kv_kwargs = {}
    if kv_bufs == 1 and nq_tiles > 1:
        kv_kwargs = dict(pipeline_mode=pl.Buffered(1))

    scale = 1.0 / math.sqrt(dk)   # module divides scores by sqrt(emb_dim_key)
    kernel = functools.partial(_sdpa_kernel, scale=scale)

    out, attn = pl.pallas_call(
        kernel,
        out_shape=(
            jax.ShapeDtypeStruct((bh, sq, d), query.dtype),
            jax.ShapeDtypeStruct((bh, sq, sk), query.dtype),
        ),
        grid_spec=pltpu.PrefetchScalarGridSpec(
            num_scalar_prefetch=0,
            grid=grid,
            in_specs=[
                pl.BlockSpec((h_blk, tq, d), lambda b, qi: (b, qi, 0)),      # Q tile
                pl.BlockSpec((h_blk, sk, d), lambda b, qi: (b, 0, 0),        # K (full per head blk)
                             **kv_kwargs),
                pl.BlockSpec((h_blk, sk, d), lambda b, qi: (b, 0, 0),        # V (full per head blk)
                             **kv_kwargs),
            ],
            out_specs=[
                pl.BlockSpec((h_blk, tq, d), lambda b, qi: (b, qi, 0)),      # output tile
                pl.BlockSpec((h_blk, tq, sk), lambda b, qi: (b, qi, 0)),     # attn tile (lane-dense in Sk)
            ],
        ),
        compiler_params=pltpu.CompilerParams(
            # Shard over head blocks, not query tiles, so each core keeps K/V
            # reuse across query tiles intact.
            dimension_semantics=("parallel", "arbitrary"),
            vmem_limit_bytes=_VMEM_LIMIT,
        ),
    )(qf, kf, vf)

    out = out.reshape(*lead_q, sq, d)
    attn = attn.reshape(*lead_q, sq, sk)
    return out, attn


def reference_jax(query, key, value):
    # Pure-JAX reference matching the PyTorch forward (mask=None).
    d_k = key.shape[-1]
    scores = jnp.einsum("...qd,...kd->...qk", query, key) / math.sqrt(d_k)
    attn = jax.nn.softmax(scores, axis=-1)
    out = jnp.einsum("...qk,...kd->...qd", attn, value)
    return out, attn


if __name__ == "__main__":
    # Multi-head layout: (batch, num_heads, seq, head_dim); hidden = 4 * 8 = 32.
    B, H, S, Dh = 2, 4, 8, 8

    root = jax.random.PRNGKey(0)
    k_q, k_k, k_v = jax.random.split(root, 3)
    query = jax.random.normal(k_q, (B, H, S, Dh), jnp.float32)
    key = jax.random.normal(k_k, (B, H, S, Dh), jnp.float32)
    value = jax.random.normal(k_v, (B, H, S, Dh), jnp.float32)

    out, attn = scaled_dot_product_attention_multihead(query, key, value)
    out = jax.block_until_ready(out)
    attn = jax.block_until_ready(attn)

    ref_out, ref_attn = reference_jax(query, key, value)
    assert out.shape == (B, H, S, Dh)
    assert attn.shape == (B, H, S, S)
    # Exact reciprocal + f32 accumulation -> tight tolerances.
    assert jnp.allclose(attn, ref_attn, atol=1e-5, rtol=1e-4), "attention weights mismatch"
    assert jnp.allclose(out, ref_out, atol=1e-5, rtol=1e-4), "output mismatch"

    print("KERNEL_OK")
</pallas_src>

<mosaic_0001>
module attributes {stable_mosaic.version = 11 : i64} {
  func.func @_sdpa_kernel(%arg0: i32, %arg1: i32, %arg2: memref<8x8x8xf32, #tpu.memory_space<vmem>>, %arg3: memref<8x8x8xf32, #tpu.memory_space<vmem>>, %arg4: memref<8x8x8xf32, #tpu.memory_space<vmem>>, %arg5: memref<8x8x8xf32, #tpu.memory_space<vmem>>, %arg6: memref<8x8x8xf32, #tpu.memory_space<vmem>>) attributes {dimension_semantics = [#tpu.dimension_semantics<parallel>, #tpu.dimension_semantics<arbitrary>], iteration_bounds = array<i64: 1, 1>, scalar_prefetch = 0 : i64, scratch_operands = 0 : i64, tpu.core_type = #tpu.core_type<tc>, window_params = [{transform_indices = @transform_0, window_bounds = array<i64: 8, 8, 8>}, {transform_indices = @transform_1, window_bounds = array<i64: 8, 8, 8>}, {transform_indices = @transform_2, window_bounds = array<i64: 8, 8, 8>}, {transform_indices = @transform_3, window_bounds = array<i64: 8, 8, 8>}, {transform_indices = @transform_4, window_bounds = array<i64: 8, 8, 8>}]} {
    %c0 = arith.constant 0 : index
    %c0_0 = arith.constant 0 : index
    %c0_1 = arith.constant 0 : index
    %0 = vector.load %arg2[%c0, %c0_0, %c0_1] : memref<8x8x8xf32, #tpu.memory_space<vmem>>, vector<8x8x8xf32>
    %c0_2 = arith.constant 0 : index
    %c0_3 = arith.constant 0 : index
    %c0_4 = arith.constant 0 : index
    %1 = vector.load %arg3[%c0_2, %c0_3, %c0_4] : memref<8x8x8xf32, #tpu.memory_space<vmem>>, vector<8x8x8xf32>
    "tpu.trace_start"() <{level = 10 : i32, message = "hqd,hkd->hqk"}> : () -> ()
    %cst = arith.constant dense<0.000000e+00> : vector<8x8x8xf32>
    %2 = tpu.matmul %0, %1, %cst {dimension_numbers = #tpu.dot_dimension_numbers<[2], [2], [1], [1], [0, 0, 0, 1, 1, 1], [0], [0]>} : vector<8x8x8xf32>, vector<8x8x8xf32>, vector<8x8x8xf32> -> vector<8x8x8xf32>
    "tpu.trace_stop"() : () -> ()
    %cst_5 = arith.constant 0.353553385 : f32
    %3 = vector.broadcast %cst_5 : f32 to vector<8x8x8xf32>
    %4 = arith.mulf %2, %3 : vector<8x8x8xf32>
    %cst_6 = arith.constant dense<0xFF800000> : vector<8x8xf32>
    %5 = vector.multi_reduction <maximumf>, %4, %cst_6 [2] : vector<8x8x8xf32> to vector<8x8xf32>
    %6 = vector.shape_cast %5 : vector<8x8xf32> to vector<8x8x1xf32>
    %7 = vector.broadcast %6 : vector<8x8x1xf32> to vector<8x8x8xf32>
    %8 = arith.subf %4, %7 : vector<8x8x8xf32>
    %9 = math.exp %8 : vector<8x8x8xf32>
    %cst_7 = arith.constant dense<0.000000e+00> : vector<8x8xf32>
    %10 = vector.multi_reduction <add>, %9, %cst_7 [2] : vector<8x8x8xf32> to vector<8x8xf32>
    %11 = vector.shape_cast %10 : vector<8x8xf32> to vector<8x8x1xf32>
    %12 = tpu.reciprocal %11 : vector<8x8x1xf32> -> vector<8x8x1xf32>
    %13 = vector.broadcast %12 : vector<8x8x1xf32> to vector<8x8x8xf32>
    %14 = arith.mulf %9, %13 : vector<8x8x8xf32>
    %c0_8 = arith.constant 0 : index
    %c0_9 = arith.constant 0 : index
    %c0_10 = arith.constant 0 : index
    %15 = vector.load %arg4[%c0_8, %c0_9, %c0_10] : memref<8x8x8xf32, #tpu.memory_space<vmem>>, vector<8x8x8xf32>
    "tpu.trace_start"() <{level = 10 : i32, message = "hqk,hkd->hqd"}> : () -> ()
    %cst_11 = arith.constant dense<0.000000e+00> : vector<8x8x8xf32>
    %16 = tpu.matmul %14, %15, %cst_11 {dimension_numbers = #tpu.dot_dimension_numbers<[2], [1], [1], [2], [0, 0, 0, 1, 1, 2], [0], [0]>} : vector<8x8x8xf32>, vector<8x8x8xf32>, vector<8x8x8xf32> -> vector<8x8x8xf32>
    "tpu.trace_stop"() : () -> ()
    %c0_12 = arith.constant 0 : index
    %c0_13 = arith.constant 0 : index
    %c0_14 = arith.constant 0 : index
    %17 = vector.load %arg5[%c0_12, %c0_13, %c0_14] : memref<8x8x8xf32, #tpu.memory_space<vmem>>, vector<8x8x8xf32>
    tpu.vector_store %arg5[%c0_12, %c0_13, %c0_14], %16 {strides = array<i32>} : memref<8x8x8xf32, #tpu.memory_space<vmem>>, vector<8x8x8xf32>,
    %c0_15 = arith.constant 0 : index
    %c0_16 = arith.constant 0 : index
    %c0_17 = arith.constant 0 : index
    %18 = vector.load %arg6[%c0_15, %c0_16, %c0_17] : memref<8x8x8xf32, #tpu.memory_space<vmem>>, vector<8x8x8xf32>
    tpu.vector_store %arg6[%c0_15, %c0_16, %c0_17], %14 {strides = array<i32>} : memref<8x8x8xf32, #tpu.memory_space<vmem>>, vector<8x8x8xf32>,
    return
  }
  func.func @transform_0(%arg0: i32, %arg1: i32) -> (i32, i32, i32) {
    %c0_i32 = arith.constant 0 : i32
    %c0_i32_0 = arith.constant 0 : i32
    return %arg0, %arg1, %c0_i32 : i32, i32, i32
  }
  func.func @transform_1(%arg0: i32, %arg1: i32) -> (i32, i32, i32) {
    %c0_i32 = arith.constant 0 : i32
    %c0_i32_0 = arith.constant 0 : i32
    %c0_i32_1 = arith.constant 0 : i32
    return %arg0, %c0_i32, %c0_i32_0 : i32, i32, i32
  }
  func.func @transform_2(%arg0: i32, %arg1: i32) -> (i32, i32, i32) {
    %c0_i32 = arith.constant 0 : i32
    %c0_i32_0 = arith.constant 0 : i32
    %c0_i32_1 = arith.constant 0 : i32
    return %arg0, %c0_i32, %c0_i32_0 : i32, i32, i32
  }
  func.func @transform_3(%arg0: i32, %arg1: i32) -> (i32, i32, i32) {
    %c0_i32 = arith.constant 0 : i32
    %c0_i32_0 = arith.constant 0 : i32
    return %arg0, %arg1, %c0_i32 : i32, i32, i32
  }
  func.func @transform_4(%arg0: i32, %arg1: i32) -> (i32, i32, i32) {
    %c0_i32 = arith.constant 0 : i32
    %c0_i32_0 = arith.constant 0 : i32
    return %arg0, %arg1, %c0_i32 : i32, i32, i32
  }
}

</mosaic_0001>

<llo_original>
// kernel: tpu_custom_call.1
$region0: #{tpu_custom_call.1}
  #allocation0 [shape = 'u32[]', space=smem, size = 0x4, offset = 0x4, fixed_abs, tag = 'smem constant byte address 0x4 - core index']
  #allocation1 [shape = 'u32[144,128]{1,0:T(1,128)}', space=vmem, size = 0x12000, scoped, tag = 'internal scratch']
  %s0 = inlined_call_operand.hbm [shape: f32[8,8,8], index: 0, kind: input, shape index: {}]
  %s1 = inlined_call_operand.hbm [shape: f32[8,8,8], index: 1, kind: input, shape index: {}]
  %s2 = inlined_call_operand.hbm [shape: f32[8,8,8], index: 2, kind: input, shape index: {}]
  %s3 = inlined_call_operand.hbm [shape: f32[8,8,8], index: 3, kind: output, shape index: {0}]
  %s4 = inlined_call_operand.hbm [shape: f32[8,8,8], index: 4, kind: output, shape index: {1}]
  %5 = xla_tuple %s3, %s4
  %s6 = sld [smem:[#allocation0]]
  $region42: #{tpu_custom_call.1} parent=0
    _
  %s8 = ssub.s32 1, %s6
  %s9 = scalar_select 0, %s8, %s6
  $region1: #{tpu_custom_call.1} parent=0
    #allocation2 [shape = 'u8[32768]{0}', space=vmem, size = 0x8000, scoped, tag = 'input window, operand 0, single buffered']
    #allocation3 [shape = 's32[1]{0}', space=sflag, size = 0x4, scoped, tag = 'scoped memory for tpu_custom_call.1']
    #allocation4 [shape = 's32[1]{0}', space=sflag, size = 0x4, scoped, tag = 'scoped memory for tpu_custom_call.1']
    #allocation5 [shape = 'u8[32768]{0}', space=vmem, size = 0x8000, scoped, tag = 'input window, operand 1, single buffered']
    #allocation6 [shape = 's32[1]{0}', space=sflag, size = 0x4, scoped, tag = 'scoped memory for tpu_custom_call.1']
    #allocation7 [shape = 'u8[32768]{0}', space=vmem, size = 0x8000, scoped, tag = 'input window, operand 2, single buffered']
    #allocation8 [shape = 'u8[32768]{0}', space=vmem, size = 0x8000, scoped, tag = 'output window, operand 0, single buffered']
    #allocation9 [shape = 'u8[32768]{0}', space=vmem, size = 0x8000, scoped, tag = 'output window, operand 1, single buffered']
    #allocation10 [shape = 's32[1]{0}', space=sflag, size = 0x4, scoped, tag = 'scoped memory for tpu_custom_call.1']
    %10 = vsyncpa [#allocation3], 0
    %11 = vsyncpa [#allocation6], 0
    %12 = vsyncpa [#allocation4], 0
    %13 = vsyncpa [#allocation10], 0
    // Predicated region
    $region2: #{tpu_custom_call.1} parent=1 // pred_check
      _
    $region3: #{tpu_custom_call.1} parent=1 // pred_check_branch
      %15 = sbr.rel (0) target = $region5
    $region4: #{tpu_custom_call.1} parent=1 // pred_region
      %s17 = ssub.s32 1024, 1024
      %18 = vsyncadd [#allocation3], %s17
      %s19 = sshll.u32 [#allocation2], 4
      %s20 = int_to_ptr.vmem [resolvable:$true] %s19
      %25 = dma.hbm_to_vmem [thread:$0]  %s0, 1024, %s20, [#allocation3], 128, 128, 8
    $region5: #{tpu_custom_call.1} parent=1 // pred_fallthru
      _
    // Predicated region
    $region6: #{tpu_custom_call.1} parent=1 // pred_check
      _
    $region7: #{tpu_custom_call.1} parent=1 // pred_check_branch
      %27 = sbr.rel (0) target = $region9
    $region8: #{tpu_custom_call.1} parent=1 // pred_region
      %s29 = ssub.s32 1024, 1024
      %30 = vsyncadd [#allocation6], %s29
      %s31 = sshll.u32 [#allocation5], 4
      %s32 = int_to_ptr.vmem [resolvable:$true] %s31
      %37 = dma.hbm_to_vmem [thread:$0]  %s1, 1024, %s32, [#allocation6], 128, 128, 8
    $region9: #{tpu_custom_call.1} parent=1 // pred_fallthru
      _
    // Predicated region
    $region10: #{tpu_custom_call.1} parent=1 // pred_check
      _
    $region11: #{tpu_custom_call.1} parent=1 // pred_check_branch
      %39 = sbr.rel (0) target = $region13
    $region12: #{tpu_custom_call.1} parent=1 // pred_region
      %s41 = ssub.s32 1024, 1024
      %42 = vsyncadd [#allocation6], %s41
      %s43 = sshll.u32 [#allocation7], 4
      %s44 = int_to_ptr.vmem [resolvable:$true] %s43
      %49 = dma.hbm_to_vmem [thread:$0]  %s2, 1024, %s44, [#allocation6], 128, 128, 8
    $region13: #{tpu_custom_call.1} parent=1 // pred_fallthru
      _
    // Predicated region
    $region14: #{tpu_custom_call.1} parent=1 // pred_check
      _
    $region15: #{tpu_custom_call.1} parent=1 // pred_check_branch
      %51 = sbr.rel (0) target = $region17
    $region16: #{tpu_custom_call.1} parent=1 // pred_region
      %52 = dma.done [#allocation3], 1024
    $region17: #{tpu_custom_call.1} parent=1 // pred_fallthru
      _
    // Predicated region
    $region18: #{tpu_custom_call.1} parent=1 // pred_check
      _
    $region19: #{tpu_custom_call.1} parent=1 // pred_check_branch
      %54 = sbr.rel (0) target = $region21
    $region20: #{tpu_custom_call.1} parent=1 // pred_region
      %55 = dma.done [#allocation6], 1024
    $region21: #{tpu_custom_call.1} parent=1 // pred_fallthru
      _
    // Predicated region
    $region22: #{tpu_custom_call.1} parent=1 // pred_check
      _
    $region23: #{tpu_custom_call.1} parent=1 // pred_check_branch
      %57 = sbr.rel (0) target = $region25
    $region24: #{tpu_custom_call.1} parent=1 // pred_region
      %58 = dma.done [#allocation6], 1024
    $region25: #{tpu_custom_call.1} parent=1 // pred_fallthru
      _
    %v59 = vld [vmem:[#allocation2] sm:$0xff]
    %v60 = vld [vmem:[#allocation2 + $0x8] sm:$0xff]
    %v61 = vld [vmem:[#allocation2 + $0x10] sm:$0xff]
    %v62 = vld [vmem:[#allocation2 + $0x18] sm:$0xff]
    %v63 = vld [vmem:[#allocation2 + $0x20] sm:$0xff]
    %v64 = vld [vmem:[#allocation2 + $0x28] sm:$0xff]
    %v65 = vld [vmem:[#allocation2 + $0x30] sm:$0xff]
    %v66 = vld [vmem:[#allocation2 + $0x38] sm:$0xff]
    %v67 = vld [vmem:[#allocation5] sm:$0xff]
    %v68 = vld [vmem:[#allocation5 + $0x8] sm:$0xff]
    %v69 = vld [vmem:[#allocation5 + $0x10] sm:$0xff]
    %v70 = vld [vmem:[#allocation5 + $0x18] sm:$0xff]
    %v71 = vld [vmem:[#allocation5 + $0x20] sm:$0xff]
    %v72 = vld [vmem:[#allocation5 + $0x28] sm:$0xff]
    %v73 = vld [vmem:[#allocation5 + $0x30] sm:$0xff]
    %v74 = vld [vmem:[#allocation5 + $0x38] sm:$0xff]
    %vm75 = vcmask 64512
    %v77 = vsel %vm75, %v59, 0
    %v80 = vsel %vm75, %v67, 0
    %82 = vmatprep.subr.mxu0 0.0
    %83 = vmatpush1.xpose.msra.mxu0 %v80
    %84 = vmatprep.subr.mxu0 0.0
    %85 = vmatpush1.xpose.msra.mxu0 0.0
    %86 = vmatprep.subr.mxu0 0.0
    %87 = vmatpush1.xpose.msra.mxu0 0.0
    %88 = vmatprep.subr.mxu0 0.0
    %89 = vmatpush1.xpose.msra.mxu0 0.0
    %90 = vmatprep.subr.mxu0 0.0
    %91 = vmatpush1.xpose.msra.mxu0 0.0
    %92 = vmatprep.subr.mxu0 0.0
    %93 = vmatpush1.xpose.msra.mxu0 0.0
    %94 = vmatprep.subr.mxu0 0.0
    %95 = vmatpush1.xpose.msra.mxu0 0.0
    %96 = vmatprep.subr.mxu0 0.0
    %97 = vmatpush1.xpose.msra.mxu0 0.0
    %98 = vmatprep.subr.mxu0 0.0
    %99 = vmatpush1.xpose.msra.mxu0 0.0
    %100 = vmatprep.subr.mxu0 0.0
    %101 = vmatpush1.xpose.msra.mxu0 0.0
    %102 = vmatprep.subr.mxu0 0.0
    %103 = vmatpush1.xpose.msra.mxu0 0.0
    %104 = vmatprep.subr.mxu0 0.0
    %105 = vmatpush1.xpose.msra.mxu0 0.0
    %106 = vmatprep.subr.mxu0 0.0
    %107 = vmatpush1.xpose.msra.mxu0 0.0
    %108 = vmatprep.subr.mxu0 0.0
    %109 = vmatpush1.xpose.msra.mxu0 0.0
    %110 = vmatprep.subr.mxu0 0.0
    %111 = vmatpush1.xpose.msra.mxu0 0.0
    %112 = vmatprep.subr.mxu0 0.0
    %113 = vmatpush1.xpose.msra.mxu0 0.0
    %114 = vmatprep.subr.mxu0 0.0
    %115 = vmatpush1.xpose.msra.mxu0 0.0
    %116 = vmatprep.subr.mxu0 0.0
    %117 = vmatpush1.xpose.msra.mxu0 0.0
    %118 = vmatprep.subr.mxu0 0.0
    %119 = vmatpush1.xpose.msra.mxu0 0.0
    %120 = vmatprep.subr.mxu0 0.0
    %121 = vmatpush1.xpose.msra.mxu0 0.0
    %122 = vmatprep.subr.mxu0 0.0
    %123 = vmatpush1.xpose.msra.mxu0 0.0
    %124 = vmatprep.subr.mxu0 0.0
    %125 = vmatpush1.xpose.msra.mxu0 0.0
    %126 = vmatprep.subr.mxu0 0.0
    %127 = vmatpush1.xpose.msra.mxu0 0.0
    %128 = vmatprep.subr.mxu0 0.0
    %129 = vmatpush1.xpose.msra.mxu0 0.0
    %130 = vmatprep.subr.mxu0 0.0
    %131 = vmatpush1.xpose.msra.mxu0 0.0
    %132 = vmatprep.subr.mxu0 0.0
    %133 = vmatpush1.xpose.msra.mxu0 0.0
    %134 = vmatprep.subr.mxu0 0.0
    %135 = vmatpush1.xpose.msra.mxu0 0.0
    %136 = vmatprep.subr.mxu0 0.0
    %137 = vmatpush1.xpose.msra.mxu0 0.0
    %138 = vmatprep.subr.mxu0 0.0
    %139 = vmatpush1.xpose.msra.mxu0 0.0
    %140 = vmatprep.subr.mxu0 0.0
    %141 = vmatpush1.xpose.msra.mxu0 0.0
    %142 = vmatprep.subr.mxu0 0.0
    %143 = vmatpush1.xpose.msra.mxu0 0.0
    %144 = vmatprep.subr.mxu0 0.0
    %145 = vmatpush1.xpose.msra.mxu0 0.0
    %146 = vmatprep.mubr.f32.mxu0 0.0
    %147 = vmatmul.mubr.f32.gmra.mrb[0].mxu0 %v77
    %v148 = vpop.f32.mrb[0].mxu0
    %v149 = vadd.f32 0.0, %v148
    %v150 = vpop.f32.mrb[0].mxu0
    %151 = vdwg.mxu0
    %v153 = vsel %vm75, %v60, 0
    %v156 = vsel %vm75, %v68, 0
    %158 = vmatprep.subr.mxu0 0.0
    %159 = vmatpush1.xpose.msra.mxu0 %v156
    %160 = vmatprep.subr.mxu0 0.0
    %161 = vmatpush1.xpose.msra.mxu0 0.0
    %162 = vmatprep.subr.mxu0 0.0
    %163 = vmatpush1.xpose.msra.mxu0 0.0
    %164 = vmatprep.subr.mxu0 0.0
    %165 = vmatpush1.xpose.msra.mxu0 0.0
    %166 = vmatprep.subr.mxu0 0.0
    %167 = vmatpush1.xpose.msra.mxu0 0.0
    %168 = vmatprep.subr.mxu0 0.0
    %169 = vmatpush1.xpose.msra.mxu0 0.0
    %170 = vmatprep.subr.mxu0 0.0
    %171 = vmatpush1.xpose.msra.mxu0 0.0
    %172 = vmatprep.subr.mxu0 0.0
    %173 = vmatpush1.xpose.msra.mxu0 0.0
    %174 = vmatprep.subr.mxu0 0.0
    %175 = vmatpush1.xpose.msra.mxu0 0.0
    %176 = vmatprep.subr.mxu0 0.0
    %177 = vmatpush1.xpose.msra.mxu0 0.0
    %178 = vmatprep.subr.mxu0 0.0
    %179 = vmatpush1.xpose.msra.mxu0 0.0
    %180 = vmatprep.subr.mxu0 0.0
    %181 = vmatpush1.xpose.msra.mxu0 0.0
    %182 = vmatprep.subr.mxu0 0.0
    %183 = vmatpush1.xpose.msra.mxu0 0.0
    %184 = vmatprep.subr.mxu0 0.0
    %185 = vmatpush1.xpose.msra.mxu0 0.0
    %186 = vmatprep.subr.mxu0 0.0
    %187 = vmatpush1.xpose.msra.mxu0 0.0
    %188 = vmatprep.subr.mxu0 0.0
    %189 = vmatpush1.xpose.msra.mxu0 0.0
    %190 = vmatprep.subr.mxu0 0.0
    %191 = vmatpush1.xpose.msra.mxu0 0.0
    %192 = vmatprep.subr.mxu0 0.0
    %193 = vmatpush1.xpose.msra.mxu0 0.0
    %194 = vmatprep.subr.mxu0 0.0
    %195 = vmatpush1.xpose.msra.mxu0 0.0
    %196 = vmatprep.subr.mxu0 0.0
    %197 = vmatpush1.xpose.msra.mxu0 0.0
    %198 = vmatprep.subr.mxu0 0.0
    %199 = vmatpush1.xpose.msra.mxu0 0.0
    %200 = vmatprep.subr.mxu0 0.0
    %201 = vmatpush1.xpose.msra.mxu0 0.0
    %202 = vmatprep.subr.mxu0 0.0
    %203 = vmatpush1.xpose.msra.mxu0 0.0
    %204 = vmatprep.subr.mxu0 0.0
    %205 = vmatpush1.xpose.msra.mxu0 0.0
    %206 = vmatprep.subr.mxu0 0.0
    %207 = vmatpush1.xpose.msra.mxu0 0.0
    %208 = vmatprep.subr.mxu0 0.0
    %209 = vmatpush1.xpose.msra.mxu0 0.0
    %210 = vmatprep.subr.mxu0 0.0
    %211 = vmatpush1.xpose.msra.mxu0 0.0
    %212 = vmatprep.subr.mxu0 0.0
    %213 = vmatpush1.xpose.msra.mxu0 0.0
    %214 = vmatprep.subr.mxu0 0.0
    %215 = vmatpush1.xpose.msra.mxu0 0.0
    %216 = vmatprep.subr.mxu0 0.0
    %217 = vmatpush1.xpose.msra.mxu0 0.0
    %218 = vmatprep.subr.mxu0 0.0
    %219 = vmatpush1.xpose.msra.mxu0 0.0
    %220 = vmatprep.subr.mxu0 0.0
    %221 = vmatpush1.xpose.msra.mxu0 0.0
    %222 = vmatprep.mubr.f32.mxu0 0.0
    %223 = vmatmul.mubr.f32.gmra.mrb[0].mxu0 %v153
    %v224 = vpop.f32.mrb[0].mxu0
    %v225 = vadd.f32 0.0, %v224
    %v226 = vpop.f32.mrb[0].mxu0
    %227 = vdwg.mxu0
    %v229 = vsel %vm75, %v61, 0
    %v232 = vsel %vm75, %v69, 0
    %234 = vmatprep.subr.mxu0 0.0
    %235 = vmatpush1.xpose.msra.mxu0 %v232
    %236 = vmatprep.subr.mxu0 0.0
    %237 = vmatpush1.xpose.msra.mxu0 0.0
    %238 = vmatprep.subr.mxu0 0.0
    %239 = vmatpush1.xpose.msra.mxu0 0.0
    %240 = vmatprep.subr.mxu0 0.0
    %241 = vmatpush1.xpose.msra.mxu0 0.0
    %242 = vmatprep.subr.mxu0 0.0
    %243 = vmatpush1.xpose.msra.mxu0 0.0
    %244 = vmatprep.subr.mxu0 0.0
    %245 = vmatpush1.xpose.msra.mxu0 0.0
    %246 = vmatprep.subr.mxu0 0.0
    %247 = vmatpush1.xpose.msra.mxu0 0.0
    %248 = vmatprep.subr.mxu0 0.0
    %249 = vmatpush1.xpose.msra.mxu0 0.0
    %250 = vmatprep.subr.mxu0 0.0
    %251 = vmatpush1.xpose.msra.mxu0 0.0
    %252 = vmatprep.subr.mxu0 0.0
    %253 = vmatpush1.xpose.msra.mxu0 0.0
    %254 = vmatprep.subr.mxu0 0.0
    %255 = vmatpush1.xpose.msra.mxu0 0.0
    %256 = vmatprep.subr.mxu0 0.0
    %257 = vmatpush1.xpose.msra.mxu0 0.0
    %258 = vmatprep.subr.mxu0 0.0
    %259 = vmatpush1.xpose.msra.mxu0 0.0
    %260 = vmatprep.subr.mxu0 0.0
    %261 = vmatpush1.xpose.msra.mxu0 0.0
    %262 = vmatprep.subr.mxu0 0.0
    %263 = vmatpush1.xpose.msra.mxu0 0.0
    %264 = vmatprep.subr.mxu0 0.0
    %265 = vmatpush1.xpose.msra.mxu0 0.0
    %266 = vmatprep.subr.mxu0 0.0
    %267 = vmatpush1.xpose.msra.mxu0 0.0
    %268 = vmatprep.subr.mxu0 0.0
    %269 = vmatpush1.xpose.msra.mxu0 0.0
    %270 = vmatprep.subr.mxu0 0.0
    %271 = vmatpush1.xpose.msra.mxu0 0.0
    %272 = vmatprep.subr.mxu0 0.0
    %273 = vmatpush1.xpose.msra.mxu0 0.0
    %274 = vmatprep.subr.mxu0 0.0
    %275 = vmatpush1.xpose.msra.mxu0 0.0
    %276 = vmatprep.subr.mxu0 0.0
    %277 = vmatpush1.xpose.msra.mxu0 0.0
    %278 = vmatprep.subr.mxu0 0.0
    %279 = vmatpush1.xpose.msra.mxu0 0.0
    %280 = vmatprep.subr.mxu0 0.0
    %281 = vmatpush1.xpose.msra.mxu0 0.0
    %282 = vmatprep.subr.mxu0 0.0
    %283 = vmatpush1.xpose.msra.mxu0 0.0
    %284 = vmatprep.subr.mxu0 0.0
    %285 = vmatpush1.xpose.msra.mxu0 0.0
    %286 = vmatprep.subr.mxu0 0.0
    %287 = vmatpush1.xpose.msra.mxu0 0.0
    %288 = vmatprep.subr.mxu0 0.0
    %289 = vmatpush1.xpose.msra.mxu0 0.0
    %290 = vmatprep.subr.mxu0 0.0
    %291 = vmatpush1.xpose.msra.mxu0 0.0
    %292 = vmatprep.subr.mxu0 0.0
    %293 = vmatpush1.xpose.msra.mxu0 0.0
    %294 = vmatprep.subr.mxu0 0.0
    %295 = vmatpush1.xpose.msra.mxu0 0.0
    %296 = vmatprep.subr.mxu0 0.0
    %297 = vmatpush1.xpose.msra.mxu0 0.0
    %298 = vmatprep.mubr.f32.mxu0 0.0
    %299 = vmatmul.mubr.f32.gmra.mrb[0].mxu0 %v229
    %v300 = vpop.f32.mrb[0].mxu0
    %v301 = vadd.f32 0.0, %v300
    %v302 = vpop.f32.mrb[0].mxu0
    %303 = vdwg.mxu0
    %v305 = vsel %vm75, %v62, 0
    %v308 = vsel %vm75, %v70, 0
    %310 = vmatprep.subr.mxu0 0.0
    %311 = vmatpush1.xpose.msra.mxu0 %v308
    %312 = vmatprep.subr.mxu0 0.0
    %313 = vmatpush1.xpose.msra.mxu0 0.0
    %314 = vmatprep.subr.mxu0 0.0
    %315 = vmatpush1.xpose.msra.mxu0 0.0
    %316 = vmatprep.subr.mxu0 0.0
    %317 = vmatpush1.xpose.msra.mxu0 0.0
    %318 = vmatprep.subr.mxu0 0.0
    %319 = vmatpush1.xpose.msra.mxu0 0.0
    %320 = vmatprep.subr.mxu0 0.0
    %321 = vmatpush1.xpose.msra.mxu0 0.0
    %322 = vmatprep.subr.mxu0 0.0
    %323 = vmatpush1.xpose.msra.mxu0 0.0
    %324 = vmatprep.subr.mxu0 0.0
    %325 = vmatpush1.xpose.msra.mxu0 0.0
    %326 = vmatprep.subr.mxu0 0.0
    %327 = vmatpush1.xpose.msra.mxu0 0.0
    %328 = vmatprep.subr.mxu0 0.0
    %329 = vmatpush1.xpose.msra.mxu0 0.0
    %330 = vmatprep.subr.mxu0 0.0
    %331 = vmatpush1.xpose.msra.mxu0 0.0
    %332 = vmatprep.subr.mxu0 0.0
    %333 = vmatpush1.xpose.msra.mxu0 0.0
    %334 = vmatprep.subr.mxu0 0.0
    %335 = vmatpush1.xpose.msra.mxu0 0.0
    %336 = vmatprep.subr.mxu0 0.0
    %337 = vmatpush1.xpose.msra.mxu0 0.0
    %338 = vmatprep.subr.mxu0 0.0
    %339 = vmatpush1.xpose.msra.mxu0 0.0
    %340 = vmatprep.subr.mxu0 0.0
    %341 = vmatpush1.xpose.msra.mxu0 0.0
    %342 = vmatprep.subr.mxu0 0.0
    %343 = vmatpush1.xpose.msra.mxu0 0.0
    %344 = vmatprep.subr.mxu0 0.0
    %345 = vmatpush1.xpose.msra.mxu0 0.0
    %346 = vmatprep.subr.mxu0 0.0
    %347 = vmatpush1.xpose.msra.mxu0 0.0
    %348 = vmatprep.subr.mxu0 0.0
    %349 = vmatpush1.xpose.msra.mxu0 0.0
    %350 = vmatprep.subr.mxu0 0.0
    %351 = vmatpush1.xpose.msra.mxu0 0.0
    %352 = vmatprep.subr.mxu0 0.0
    %353 = vmatpush1.xpose.msra.mxu0 0.0
    %354 = vmatprep.subr.mxu0 0.0
    %355 = vmatpush1.xpose.msra.mxu0 0.0
    %356 = vmatprep.subr.mxu0 0.0
    %357 = vmatpush1.xpose.msra.mxu0 0.0
    %358 = vmatprep.subr.mxu0 0.0
    %359 = vmatpush1.xpose.msra.mxu0 0.0
    %360 = vmatprep.subr.mxu0 0.0
    %361 = vmatpush1.xpose.msra.mxu0 0.0
    %362 = vmatprep.subr.mxu0 0.0
    %363 = vmatpush1.xpose.msra.mxu0 0.0
    %364 = vmatprep.subr.mxu0 0.0
    %365 = vmatpush1.xpose.msra.mxu0 0.0
    %366 = vmatprep.subr.mxu0 0.0
    %367 = vmatpush1.xpose.msra.mxu0 0.0
    %368 = vmatprep.subr.mxu0 0.0
    %369 = vmatpush1.xpose.msra.mxu0 0.0
    %370 = vmatprep.subr.mxu0 0.0
    %371 = vmatpush1.xpose.msra.mxu0 0.0
    %372 = vmatprep.subr.mxu0 0.0
    %373 = vmatpush1.xpose.msra.mxu0 0.0
    %374 = vmatprep.mubr.f32.mxu0 0.0
    %375 = vmatmul.mubr.f32.gmra.mrb[0].mxu0 %v305
    %v376 = vpop.f32.mrb[0].mxu0
    %v377 = vadd.f32 0.0, %v376
    %v378 = vpop.f32.mrb[0].mxu0
    %379 = vdwg.mxu0
    %v381 = vsel %vm75, %v63, 0
    %v384 = vsel %vm75, %v71, 0
    %386 = vmatprep.subr.mxu0 0.0
    %387 = vmatpush1.xpose.msra.mxu0 %v384
    %388 = vmatprep.subr.mxu0 0.0
    %389 = vmatpush1.xpose.msra.mxu0 0.0
    %390 = vmatprep.subr.mxu0 0.0
    %391 = vmatpush1.xpose.msra.mxu0 0.0
    %392 = vmatprep.subr.mxu0 0.0
    %393 = vmatpush1.xpose.msra.mxu0 0.0
    %394 = vmatprep.subr.mxu0 0.0
    %395 = vmatpush1.xpose.msra.mxu0 0.0
    %396 = vmatprep.subr.mxu0 0.0
    %397 = vmatpush1.xpose.msra.mxu0 0.0
    %398 = vmatprep.subr.mxu0 0.0
    %399 = vmatpush1.xpose.msra.mxu0 0.0
    %400 = vmatprep.subr.mxu0 0.0
    %401 = vmatpush1.xpose.msra.mxu0 0.0
    %402 = vmatprep.subr.mxu0 0.0
    %403 = vmatpush1.xpose.msra.mxu0 0.0
    %404 = vmatprep.subr.mxu0 0.0
    %405 = vmatpush1.xpose.msra.mxu0 0.0
    %406 = vmatprep.subr.mxu0 0.0
    %407 = vmatpush1.xpose.msra.mxu0 0.0
    %408 = vmatprep.subr.mxu0 0.0
    %409 = vmatpush1.xpose.msra.mxu0 0.0
    %410 = vmatprep.subr.mxu0 0.0
    %411 = vmatpush1.xpose.msra.mxu0 0.0
    %412 = vmatprep.subr.mxu0 0.0
    %413 = vmatpush1.xpose.msra.mxu0 0.0
    %414 = vmatprep.subr.mxu0 0.0
    %415 = vmatpush1.xpose.msra.mxu0 0.0
    %416 = vmatprep.subr.mxu0 0.0
    %417 = vmatpush1.xpose.msra.mxu0 0.0
    %418 = vmatprep.subr.mxu0 0.0
    %419 = vmatpush1.xpose.msra.mxu0 0.0
    %420 = vmatprep.subr.mxu0 0.0
    %421 = vmatpush1.xpose.msra.mxu0 0.0
    %422 = vmatprep.subr.mxu0 0.0
    %423 = vmatpush1.xpose.msra.mxu0 0.0
    %424 = vmatprep.subr.mxu0 0.0
    %425 = vmatpush1.xpose.msra.mxu0 0.0
    %426 = vmatprep.subr.mxu0 0.0
    %427 = vmatpush1.xpose.msra.mxu0 0.0
    %428 = vmatprep.subr.mxu0 0.0
    %429 = vmatpush1.xpose.msra.mxu0 0.0
    %430 = vmatprep.subr.mxu0 0.0
    %431 = vmatpush1.xpose.msra.mxu0 0.0
    %432 = vmatprep.subr.mxu0 0.0
    %433 = vmatpush1.xpose.msra.mxu0 0.0
    %434 = vmatprep.subr.mxu0 0.0
    %435 = vmatpush1.xpose.msra.mxu0 0.0
    %436 = vmatprep.subr.mxu0 0.0
    %437 = vmatpush1.xpose.msra.mxu0 0.0
    %438 = vmatprep.subr.mxu0 0.0
    %439 = vmatpush1.xpose.msra.mxu0 0.0
    %440 = vmatprep.subr.mxu0 0.0
    %441 = vmatpush1.xpose.msra.mxu0 0.0
    %442 = vmatprep.subr.mxu0 0.0
    %443 = vmatpush1.xpose.msra.mxu0 0.0
    %444 = vmatprep.subr.mxu0 0.0
    %445 = vmatpush1.xpose.msra.mxu0 0.0
    %446 = vmatprep.subr.mxu0 0.0
    %447 = vmatpush1.xpose.msra.mxu0 0.0
    %448 = vmatprep.subr.mxu0 0.0
    %449 = vmatpush1.xpose.msra.mxu0 0.0
    %450 = vmatprep.mubr.f32.mxu0 0.0
    %451 = vmatmul.mubr.f32.gmra.mrb[0].mxu0 %v381
    %v452 = vpop.f32.mrb[0].mxu0
    %v453 = vadd.f32 0.0, %v452
    %v454 = vpop.f32.mrb[0].mxu0
    %455 = vdwg.mxu0
    %v457 = vsel %vm75, %v64, 0
    %v460 = vsel %vm75, %v72, 0
    %462 = vmatprep.subr.mxu0 0.0
    %463 = vmatpush1.xpose.msra.mxu0 %v460
    %464 = vmatprep.subr.mxu0 0.0
    %465 = vmatpush1.xpose.msra.mxu0 0.0
    %466 = vmatprep.subr.mxu0 0.0
    %467 = vmatpush1.xpose.msra.mxu0 0.0
    %468 = vmatprep.subr.mxu0 0.0
    %469 = vmatpush1.xpose.msra.mxu0 0.0
    %470 = vmatprep.subr.mxu0 0.0
    %471 = vmatpush1.xpose.msra.mxu0 0.0
    %472 = vmatprep.subr.mxu0 0.0
    %473 = vmatpush1.xpose.msra.mxu0 0.0
    %474 = vmatprep.subr.mxu0 0.0
    %475 = vmatpush1.xpose.msra.mxu0 0.0
    %476 = vmatprep.subr.mxu0 0.0
    %477 = vmatpush1.xpose.msra.mxu0 0.0
    %478 = vmatprep.subr.mxu0 0.0
    %479 = vmatpush1.xpose.msra.mxu0 0.0
    %480 = vmatprep.subr.mxu0 0.0
    %481 = vmatpush1.xpose.msra.mxu0 0.0
    %482 = vmatprep.subr.mxu0 0.0
    %483 = vmatpush1.xpose.msra.mxu0 0.0
    %484 = vmatprep.subr.mxu0 0.0
    %485 = vmatpush1.xpose.msra.mxu0 0.0
    %486 = vmatprep.subr.mxu0 0.0
    %487 = vmatpush1.xpose.msra.mxu0 0.0
    %488 = vmatprep.subr.mxu0 0.0
    %489 = vmatpush1.xpose.msra.mxu0 0.0
    %490 = vmatprep.subr.mxu0 0.0
    %491 = vmatpush1.xpose.msra.mxu0 0.0
    %492 = vmatprep.subr.mxu0 0.0
    %493 = vmatpush1.xpose.msra.mxu0 0.0
    %494 = vmatprep.subr.mxu0 0.0
    %495 = vmatpush1.xpose.msra.mxu0 0.0
    %496 = vmatprep.subr.mxu0 0.0
    %497 = vmatpush1.xpose.msra.mxu0 0.0
    %498 = vmatprep.subr.mxu0 0.0
    %499 = vmatpush1.xpose.msra.mxu0 0.0
    %500 = vmatprep.subr.mxu0 0.0
    %501 = vmatpush1.xpose.msra.mxu0 0.0
    %502 = vmatprep.subr.mxu0 0.0
    %503 = vmatpush1.xpose.msra.mxu0 0.0
    %504 = vmatprep.subr.mxu0 0.0
    %505 = vmatpush1.xpose.msra.mxu0 0.0
    %506 = vmatprep.subr.mxu0 0.0
    %507 = vmatpush1.xpose.msra.mxu0 0.0
    %508 = vmatprep.subr.mxu0 0.0
    %509 = vmatpush1.xpose.msra.mxu0 0.0
    %510 = vmatprep.subr.mxu0 0.0
    %511 = vmatpush1.xpose.msra.mxu0 0.0
    %512 = vmatprep.subr.mxu0 0.0
    %513 = vmatpush1.xpose.msra.mxu0 0.0
    %514 = vmatprep.subr.mxu0 0.0
    %515 = vmatpush1.xpose.msra.mxu0 0.0
    %516 = vmatprep.subr.mxu0 0.0
    %517 = vmatpush1.xpose.msra.mxu0 0.0
    %518 = vmatprep.subr.mxu0 0.0
    %519 = vmatpush1.xpose.msra.mxu0 0.0
    %520 = vmatprep.subr.mxu0 0.0
    %521 = vmatpush1.xpose.msra.mxu0 0.0
    %522 = vmatprep.subr.mxu0 0.0
    %523 = vmatpush1.xpose.msra.mxu0 0.0
    %524 = vmatprep.subr.mxu0 0.0
    %525 = vmatpush1.xpose.msra.mxu0 0.0
    %526 = vmatprep.mubr.f32.mxu0 0.0
    %527 = vmatmul.mubr.f32.gmra.mrb[0].mxu0 %v457
    %v528 = vpop.f32.mrb[0].mxu0
    %v529 = vadd.f32 0.0, %v528
    %v530 = vpop.f32.mrb[0].mxu0
    %531 = vdwg.mxu0
    %v533 = vsel %vm75, %v65, 0
    %v536 = vsel %vm75, %v73, 0
    %538 = vmatprep.subr.mxu0 0.0
    %539 = vmatpush1.xpose.msra.mxu0 %v536
    %540 = vmatprep.subr.mxu0 0.0
    %541 = vmatpush1.xpose.msra.mxu0 0.0
    %542 = vmatprep.subr.mxu0 0.0
    %543 = vmatpush1.xpose.msra.mxu0 0.0
    %544 = vmatprep.subr.mxu0 0.0
    %545 = vmatpush1.xpose.msra.mxu0 0.0
    %546 = vmatprep.subr.mxu0 0.0
    %547 = vmatpush1.xpose.msra.mxu0 0.0
    %548 = vmatprep.subr.mxu0 0.0
    %549 = vmatpush1.xpose.msra.mxu0 0.0
    %550 = vmatprep.subr.mxu0 0.0
    %551 = vmatpush1.xpose.msra.mxu0 0.0
    %552 = vmatprep.subr.mxu0 0.0
    %553 = vmatpush1.xpose.msra.mxu0 0.0
    %554 = vmatprep.subr.mxu0 0.0
    %555 = vmatpush1.xpose.msra.mxu0 0.0
    %556 = vmatprep.subr.mxu0 0.0
    %557 = vmatpush1.xpose.msra.mxu0 0.0
    %558 = vmatprep.subr.mxu0 0.0
    %559 = vmatpush1.xpose.msra.mxu0 0.0
    %560 = vmatprep.subr.mxu0 0.0
    %561 = vmatpush1.xpose.msra.mxu0 0.0
    %562 = vmatprep.subr.mxu0 0.0
    %563 = vmatpush1.xpose.msra.mxu0 0.0
    %564 = vmatprep.subr.mxu0 0.0
    %565 = vmatpush1.xpose.msra.mxu0 0.0
    %566 = vmatprep.subr.mxu0 0.0
    %567 = vmatpush1.xpose.msra.mxu0 0.0
    %568 = vmatprep.subr.mxu0 0.0
    %569 = vmatpush1.xpose.msra.mxu0 0.0
    %570 = vmatprep.subr.mxu0 0.0
    %571 = vmatpush1.xpose.msra.mxu0 0.0
    %572 = vmatprep.subr.mxu0 0.0
    %573 = vmatpush1.xpose.msra.mxu0 0.0
    %574 = vmatprep.subr.mxu0 0.0
    %575 = vmatpush1.xpose.msra.mxu0 0.0
    %576 = vmatprep.subr.mxu0 0.0
    %577 = vmatpush1.xpose.msra.mxu0 0.0
    %578 = vmatprep.subr.mxu0 0.0
    %579 = vmatpush1.xpose.msra.mxu0 0.0
    %580 = vmatprep.subr.mxu0 0.0
    %581 = vmatpush1.xpose.msra.mxu0 0.0
    %582 = vmatprep.subr.mxu0 0.0
    %583 = vmatpush1.xpose.msra.mxu0 0.0
    %584 = vmatprep.subr.mxu0 0.0
    %585 = vmatpush1.xpose.msra.mxu0 0.0
    %586 = vmatprep.subr.mxu0 0.0
    %587 = vmatpush1.xpose.msra.mxu0 0.0
    %588 = vmatprep.subr.mxu0 0.0
    %589 = vmatpush1.xpose.msra.mxu0 0.0
    %590 = vmatprep.subr.mxu0 0.0
    %591 = vmatpush1.xpose.msra.mxu0 0.0
    %592 = vmatprep.subr.mxu0 0.0
    %593 = vmatpush1.xpose.msra.mxu0 0.0
    %594 = vmatprep.subr.mxu0 0.0
    %595 = vmatpush1.xpose.msra.mxu0 0.0
    %596 = vmatprep.subr.mxu0 0.0
    %597 = vmatpush1.xpose.msra.mxu0 0.0
    %598 = vmatprep.subr.mxu0 0.0
    %599 = vmatpush1.xpose.msra.mxu0 0.0
    %600 = vmatprep.subr.mxu0 0.0
    %601 = vmatpush1.xpose.msra.mxu0 0.0
    %602 = vmatprep.mubr.f32.mxu0 0.0
    %603 = vmatmul.mubr.f32.gmra.mrb[0].mxu0 %v533
    %v604 = vpop.f32.mrb[0].mxu0
    %v605 = vadd.f32 0.0, %v604
    %v606 = vpop.f32.mrb[0].mxu0
    %607 = vdwg.mxu0
    %v609 = vsel %vm75, %v66, 0
    %v612 = vsel %vm75, %v74, 0
    %614 = vmatprep.subr.mxu0 0.0
    %615 = vmatpush1.xpose.msra.mxu0 %v612
    %616 = vmatprep.subr.mxu0 0.0
    %617 = vmatpush1.xpose.msra.mxu0 0.0
    %618 = vmatprep.subr.mxu0 0.0
    %619 = vmatpush1.xpose.msra.mxu0 0.0
    %620 = vmatprep.subr.mxu0 0.0
    %621 = vmatpush1.xpose.msra.mxu0 0.0
    %622 = vmatprep.subr.mxu0 0.0
    %623 = vmatpush1.xpose.msra.mxu0 0.0
    %624 = vmatprep.subr.mxu0 0.0
    %625 = vmatpush1.xpose.msra.mxu0 0.0
    %626 = vmatprep.subr.mxu0 0.0
    %627 = vmatpush1.xpose.msra.mxu0 0.0
    %628 = vmatprep.subr.mxu0 0.0
    %629 = vmatpush1.xpose.msra.mxu0 0.0
    %630 = vmatprep.subr.mxu0 0.0
    %631 = vmatpush1.xpose.msra.mxu0 0.0
    %632 = vmatprep.subr.mxu0 0.0
    %633 = vmatpush1.xpose.msra.mxu0 0.0
    %634 = vmatprep.subr.mxu0 0.0
    %635 = vmatpush1.xpose.msra.mxu0 0.0
    %636 = vmatprep.subr.mxu0 0.0
    %637 = vmatpush1.xpose.msra.mxu0 0.0
    %638 = vmatprep.subr.mxu0 0.0
    %639 = vmatpush1.xpose.msra.mxu0 0.0
    %640 = vmatprep.subr.mxu0 0.0
    %641 = vmatpush1.xpose.msra.mxu0 0.0
    %642 = vmatprep.subr.mxu0 0.0
    %643 = vmatpush1.xpose.msra.mxu0 0.0
    %644 = vmatprep.subr.mxu0 0.0
    %645 = vmatpush1.xpose.msra.mxu0 0.0
    %646 = vmatprep.subr.mxu0 0.0
    %647 = vmatpush1.xpose.msra.mxu0 0.0
    %648 = vmatprep.subr.mxu0 0.0
    %649 = vmatpush1.xpose.msra.mxu0 0.0
    %650 = vmatprep.subr.mxu0 0.0
    %651 = vmatpush1.xpose.msra.mxu0 0.0
    %652 = vmatprep.subr.mxu0 0.0
    %653 = vmatpush1.xpose.msra.mxu0 0.0
    %654 = vmatprep.subr.mxu0 0.0
    %655 = vmatpush1.xpose.msra.mxu0 0.0
    %656 = vmatprep.subr.mxu0 0.0
    %657 = vmatpush1.xpose.msra.mxu0 0.0
    %658 = vmatprep.subr.mxu0 0.0
    %659 = vmatpush1.xpose.msra.mxu0 0.0
    %660 = vmatprep.subr.mxu0 0.0
    %661 = vmatpush1.xpose.msra.mxu0 0.0
    %662 = vmatprep.subr.mxu0 0.0
    %663 = vmatpush1.xpose.msra.mxu0 0.0
    %664 = vmatprep.subr.mxu0 0.0
    %665 = vmatpush1.xpose.msra.mxu0 0.0
    %666 = vmatprep.subr.mxu0 0.0
    %667 = vmatpush1.xpose.msra.mxu0 0.0
    %668 = vmatprep.subr.mxu0 0.0
    %669 = vmatpush1.xpose.msra.mxu0 0.0
    %670 = vmatprep.subr.mxu0 0.0
    %671 = vmatpush1.xpose.msra.mxu0 0.0
    %672 = vmatprep.subr.mxu0 0.0
    %673 = vmatpush1.xpose.msra.mxu0 0.0
    %674 = vmatprep.subr.mxu0 0.0
    %675 = vmatpush1.xpose.msra.mxu0 0.0
    %676 = vmatprep.subr.mxu0 0.0
    %677 = vmatpush1.xpose.msra.mxu0 0.0
    %678 = vmatprep.mubr.f32.mxu0 0.0
    %679 = vmatmul.mubr.f32.gmra.mrb[0].mxu0 %v609
    %v680 = vpop.f32.mrb[0].mxu0
    %v681 = vadd.f32 0.0, %v680
    %v682 = vpop.f32.mrb[0].mxu0
    %683 = vdwg.mxu0
    %v684 = vmul.f32 %v149, 0.35355338
    %v685 = vmul.f32 %v225, 0.35355338
    %v686 = vmul.f32 %v301, 0.35355338
    %v687 = vmul.f32 %v377, 0.35355338
    %v688 = vmul.f32 %v453, 0.35355338
    %v689 = vmul.f32 %v529, 0.35355338
    %v690 = vmul.f32 %v605, 0.35355338
    %v691 = vmul.f32 %v681, 0.35355338
    %v692 = vsel %vm75, %v684, -inf
    %693 = vmax.xlane.f32.xlu0 %v692
    %v694 = vpop.xlane.xlu0 %693
    %v695 = vsel %vm75, %v685, -inf
    %696 = vmax.xlane.f32.xlu0 %v695
    %v697 = vpop.xlane.xlu0 %696
    %v698 = vsel %vm75, %v686, -inf
    %699 = vmax.xlane.f32.xlu0 %v698
    %v700 = vpop.xlane.xlu0 %699
    %v701 = vsel %vm75, %v687, -inf
    %702 = vmax.xlane.f32.xlu0 %v701
    %v703 = vpop.xlane.xlu0 %702
    %v704 = vsel %vm75, %v688, -inf
    %705 = vmax.xlane.f32.xlu0 %v704
    %v706 = vpop.xlane.xlu0 %705
    %v707 = vsel %vm75, %v689, -inf
    %708 = vmax.xlane.f32.xlu0 %v707
    %v709 = vpop.xlane.xlu0 %708
    %v710 = vsel %vm75, %v690, -inf
    %711 = vmax.xlane.f32.xlu0 %v710
    %v712 = vpop.xlane.xlu0 %711
    %v713 = vsel %vm75, %v691, -inf
    %714 = vmax.xlane.f32.xlu0 %v713
    %v715 = vpop.xlane.xlu0 %714
    %v716 = vsub.f32 %v684, %v694
    %v717 = vsub.f32 %v685, %v697
    %v718 = vsub.f32 %v686, %v700
    %v719 = vsub.f32 %v687, %v703
    %v720 = vsub.f32 %v688, %v706
    %v721 = vsub.f32 %v689, %v709
    %v722 = vsub.f32 %v690, %v712
    %v723 = vsub.f32 %v691, %v715
    %v724 = vmul.f32 %v716, 1.442695
    %v725 = vpow.pop %v724
    %v726 = vmul.f32 %v717, 1.442695
    %v727 = vpow.pop %v726
    %v728 = vmul.f32 %v718, 1.442695
    %v729 = vpow.pop %v728
    %v730 = vmul.f32 %v719, 1.442695
    %v731 = vpow.pop %v730
    %v732 = vmul.f32 %v720, 1.442695
    %v733 = vpow.pop %v732
    %v734 = vmul.f32 %v721, 1.442695
    %v735 = vpow.pop %v734
    %v736 = vmul.f32 %v722, 1.442695
    %v737 = vpow.pop %v736
    %v738 = vmul.f32 %v723, 1.442695
    %v739 = vpow.pop %v738
    %v740 = vsel %vm75, %v725, 0.0
    %741 = vadd.xlane.f32.xlu0 %v740
    %v742 = vpop.xlane.xlu0 %741
    %v743 = vsel %vm75, %v727, 0.0
    %744 = vadd.xlane.f32.xlu0 %v743
    %v745 = vpop.xlane.xlu0 %744
    %v746 = vsel %vm75, %v729, 0.0
    %747 = vadd.xlane.f32.xlu0 %v746
    %v748 = vpop.xlane.xlu0 %747
    %v749 = vsel %vm75, %v731, 0.0
    %750 = vadd.xlane.f32.xlu0 %v749
    %v751 = vpop.xlane.xlu0 %750
    %v752 = vsel %vm75, %v733, 0.0
    %753 = vadd.xlane.f32.xlu0 %v752
    %v754 = vpop.xlane.xlu0 %753
    %v755 = vsel %vm75, %v735, 0.0
    %756 = vadd.xlane.f32.xlu0 %v755
    %v757 = vpop.xlane.xlu0 %756
    %v758 = vsel %vm75, %v737, 0.0
    %759 = vadd.xlane.f32.xlu0 %v758
    %v760 = vpop.xlane.xlu0 %759
    %v761 = vsel %vm75, %v739, 0.0
    %762 = vadd.xlane.f32.xlu0 %v761
    %v763 = vpop.xlane.xlu0 %762
    %v764 = vrcp.pop %v742
    %v765 = vrcp.pop %v745
    %v766 = vrcp.pop %v748
    %v767 = vrcp.pop %v751
    %v768 = vrcp.pop %v754
    %v769 = vrcp.pop %v757
    %v770 = vrcp.pop %v760
    %v771 = vrcp.pop %v763
    %v772 = vmul.f32 %v725, %v764
    %v773 = vmul.f32 %v727, %v765
    %v774 = vmul.f32 %v729, %v766
    %v775 = vmul.f32 %v731, %v767
    %v776 = vmul.f32 %v733, %v768
    %v777 = vmul.f32 %v735, %v769
    %v778 = vmul.f32 %v737, %v770
    %v779 = vmul.f32 %v739, %v771
    %v780 = vld [vmem:[#allocation7] sm:$0xff]
    %v781 = vld [vmem:[#allocation7 + $0x8] sm:$0xff]
    %v782 = vld [vmem:[#allocation7 + $0x10] sm:$0xff]
    %v783 = vld [vmem:[#allocation7 + $0x18] sm:$0xff]
    %v784 = vld [vmem:[#allocation7 + $0x20] sm:$0xff]
    %v785 = vld [vmem:[#allocation7 + $0x28] sm:$0xff]
    %v786 = vld [vmem:[#allocation7 + $0x30] sm:$0xff]
    %v787 = vld [vmem:[#allocation7 + $0x38] sm:$0xff]
    %v789 = vsel %vm75, %v772, 0
    %791 = vmatprep.subr.mxu0 0.0
    %792 = vmatpush1.msra.mxu0 %v780
    %793 = vmatprep.subr.mxu0 0.0
    %794 = vmatpush1.msra.mxu0 0.0
    %795 = vmatprep.subr.mxu0 0.0
    %796 = vmatpush1.msra.mxu0 0.0
    %797 = vmatprep.subr.mxu0 0.0
    %798 = vmatpush1.msra.mxu0 0.0
    %799 = vmatprep.subr.mxu0 0.0
    %800 = vmatpush1.msra.mxu0 0.0
    %801 = vmatprep.subr.mxu0 0.0
    %802 = vmatpush1.msra.mxu0 0.0
    %803 = vmatprep.subr.mxu0 0.0
    %804 = vmatpush1.msra.mxu0 0.0
    %805 = vmatprep.subr.mxu0 0.0
    %806 = vmatpush1.msra.mxu0 0.0
    %807 = vmatprep.subr.mxu0 0.0
    %808 = vmatpush1.msra.mxu0 0.0
    %809 = vmatprep.subr.mxu0 0.0
    %810 = vmatpush1.msra.mxu0 0.0
    %811 = vmatprep.subr.mxu0 0.0
    %812 = vmatpush1.msra.mxu0 0.0
    %813 = vmatprep.subr.mxu0 0.0
    %814 = vmatpush1.msra.mxu0 0.0
    %815 = vmatprep.subr.mxu0 0.0
    %816 = vmatpush1.msra.mxu0 0.0
    %817 = vmatprep.subr.mxu0 0.0
    %818 = vmatpush1.msra.mxu0 0.0
    %819 = vmatprep.subr.mxu0 0.0
    %820 = vmatpush1.msra.mxu0 0.0
    %821 = vmatprep.subr.mxu0 0.0
    %822 = vmatpush1.msra.mxu0 0.0
    %823 = vmatprep.subr.mxu0 0.0
    %824 = vmatpush1.msra.mxu0 0.0
    %825 = vmatprep.subr.mxu0 0.0
    %826 = vmatpush1.msra.mxu0 0.0
    %827 = vmatprep.subr.mxu0 0.0
    %828 = vmatpush1.msra.mxu0 0.0
    %829 = vmatprep.subr.mxu0 0.0
    %830 = vmatpush1.msra.mxu0 0.0
    %831 = vmatprep.subr.mxu0 0.0
    %832 = vmatpush1.msra.mxu0 0.0
    %833 = vmatprep.subr.mxu0 0.0
    %834 = vmatpush1.msra.mxu0 0.0
    %835 = vmatprep.subr.mxu0 0.0
    %836 = vmatpush1.msra.mxu0 0.0
    %837 = vmatprep.subr.mxu0 0.0
    %838 = vmatpush1.msra.mxu0 0.0
    %839 = vmatprep.subr.mxu0 0.0
    %840 = vmatpush1.msra.mxu0 0.0
    %841 = vmatprep.subr.mxu0 0.0
    %842 = vmatpush1.msra.mxu0 0.0
    %843 = vmatprep.subr.mxu0 0.0
    %844 = vmatpush1.msra.mxu0 0.0
    %845 = vmatprep.subr.mxu0 0.0
    %846 = vmatpush1.msra.mxu0 0.0
    %847 = vmatprep.subr.mxu0 0.0
    %848 = vmatpush1.msra.mxu0 0.0
    %849 = vmatprep.subr.mxu0 0.0
    %850 = vmatpush1.msra.mxu0 0.0
    %851 = vmatprep.subr.mxu0 0.0
    %852 = vmatpush1.msra.mxu0 0.0
    %853 = vmatprep.subr.mxu0 0.0
    %854 = vmatpush1.msra.mxu0 0.0
    %855 = vmatprep.mubr.f32.mxu0 0.0
    %856 = vmatmul.mubr.f32.gmra.mrb[0].mxu0 %v789
    %v857 = vpop.f32.mrb[0].mxu0
    %v858 = vadd.f32 0.0, %v857
    %v859 = vpop.f32.mrb[0].mxu0
    %860 = vdwg.mxu0
    %v862 = vsel %vm75, %v773, 0
    %864 = vmatprep.subr.mxu0 0.0
    %865 = vmatpush1.msra.mxu0 %v781
    %866 = vmatprep.subr.mxu0 0.0
    %867 = vmatpush1.msra.mxu0 0.0
    %868 = vmatprep.subr.mxu0 0.0
    %869 = vmatpush1.msra.mxu0 0.0
    %870 = vmatprep.subr.mxu0 0.0
    %871 = vmatpush1.msra.mxu0 0.0
    %872 = vmatprep.subr.mxu0 0.0
    %873 = vmatpush1.msra.mxu0 0.0
    %874 = vmatprep.subr.mxu0 0.0
    %875 = vmatpush1.msra.mxu0 0.0
    %876 = vmatprep.subr.mxu0 0.0
    %877 = vmatpush1.msra.mxu0 0.0
    %878 = vmatprep.subr.mxu0 0.0
    %879 = vmatpush1.msra.mxu0 0.0
    %880 = vmatprep.subr.mxu0 0.0
    %881 = vmatpush1.msra.mxu0 0.0
    %882 = vmatprep.subr.mxu0 0.0
    %883 = vmatpush1.msra.mxu0 0.0
    %884 = vmatprep.subr.mxu0 0.0
    %885 = vmatpush1.msra.mxu0 0.0
    %886 = vmatprep.subr.mxu0 0.0
    %887 = vmatpush1.msra.mxu0 0.0
    %888 = vmatprep.subr.mxu0 0.0
    %889 = vmatpush1.msra.mxu0 0.0
    %890 = vmatprep.subr.mxu0 0.0
    %891 = vmatpush1.msra.mxu0 0.0
    %892 = vmatprep.subr.mxu0 0.0
    %893 = vmatpush1.msra.mxu0 0.0
    %894 = vmatprep.subr.mxu0 0.0
    %895 = vmatpush1.msra.mxu0 0.0
    %896 = vmatprep.subr.mxu0 0.0
    %897 = vmatpush1.msra.mxu0 0.0
    %898 = vmatprep.subr.mxu0 0.0
    %899 = vmatpush1.msra.mxu0 0.0
    %900 = vmatprep.subr.mxu0 0.0
    %901 = vmatpush1.msra.mxu0 0.0
    %902 = vmatprep.subr.mxu0 0.0
    %903 = vmatpush1.msra.mxu0 0.0
    %904 = vmatprep.subr.mxu0 0.0
    %905 = vmatpush1.msra.mxu0 0.0
    %906 = vmatprep.subr.mxu0 0.0
    %907 = vmatpush1.msra.mxu0 0.0
    %908 = vmatprep.subr.mxu0 0.0
    %909 = vmatpush1.msra.mxu0 0.0
    %910 = vmatprep.subr.mxu0 0.0
    %911 = vmatpush1.msra.mxu0 0.0
    %912 = vmatprep.subr.mxu0 0.0
    %913 = vmatpush1.msra.mxu0 0.0
    %914 = vmatprep.subr.mxu0 0.0
    %915 = vmatpush1.msra.mxu0 0.0
    %916 = vmatprep.subr.mxu0 0.0
    %917 = vmatpush1.msra.mxu0 0.0
    %918 = vmatprep.subr.mxu0 0.0
    %919 = vmatpush1.msra.mxu0 0.0
    %920 = vmatprep.subr.mxu0 0.0
    %921 = vmatpush1.msra.mxu0 0.0
    %922 = vmatprep.subr.mxu0 0.0
    %923 = vmatpush1.msra.mxu0 0.0
    %924 = vmatprep.subr.mxu0 0.0
    %925 = vmatpush1.msra.mxu0 0.0
    %926 = vmatprep.subr.mxu0 0.0
    %927 = vmatpush1.msra.mxu0 0.0
    %928 = vmatprep.mubr.f32.mxu0 0.0
    %929 = vmatmul.mubr.f32.gmra.mrb[0].mxu0 %v862
    %v930 = vpop.f32.mrb[0].mxu0
    %v931 = vadd.f32 0.0, %v930
    %v932 = vpop.f32.mrb[0].mxu0
    %933 = vdwg.mxu0
    %v935 = vsel %vm75, %v774, 0
    %937 = vmatprep.subr.mxu0 0.0
    %938 = vmatpush1.msra.mxu0 %v782
    %939 = vmatprep.subr.mxu0 0.0
    %940 = vmatpush1.msra.mxu0 0.0
    %941 = vmatprep.subr.mxu0 0.0
    %942 = vmatpush1.msra.mxu0 0.0
    %943 = vmatprep.subr.mxu0 0.0
    %944 = vmatpush1.msra.mxu0 0.0
    %945 = vmatprep.subr.mxu0 0.0
    %946 = vmatpush1.msra.mxu0 0.0
    %947 = vmatprep.subr.mxu0 0.0
    %948 = vmatpush1.msra.mxu0 0.0
    %949 = vmatprep.subr.mxu0 0.0
    %950 = vmatpush1.msra.mxu0 0.0
    %951 = vmatprep.subr.mxu0 0.0
    %952 = vmatpush1.msra.mxu0 0.0
    %953 = vmatprep.subr.mxu0 0.0
    %954 = vmatpush1.msra.mxu0 0.0
    %955 = vmatprep.subr.mxu0 0.0
    %956 = vmatpush1.msra.mxu0 0.0
    %957 = vmatprep.subr.mxu0 0.0
    %958 = vmatpush1.msra.mxu0 0.0
    %959 = vmatprep.subr.mxu0 0.0
    %960 = vmatpush1.msra.mxu0 0.0
    %961 = vmatprep.subr.mxu0 0.0
    %962 = vmatpush1.msra.mxu0 0.0
    %963 = vmatprep.subr.mxu0 0.0
    %964 = vmatpush1.msra.mxu0 0.0
    %965 = vmatprep.subr.mxu0 0.0
    %966 = vmatpush1.msra.mxu0 0.0
    %967 = vmatprep.subr.mxu0 0.0
    %968 = vmatpush1.msra.mxu0 0.0
    %969 = vmatprep.subr.mxu0 0.0
    %970 = vmatpush1.msra.mxu0 0.0
    %971 = vmatprep.subr.mxu0 0.0
    %972 = vmatpush1.msra.mxu0 0.0
    %973 = vmatprep.subr.mxu0 0.0
    %974 = vmatpush1.msra.mxu0 0.0
    %975 = vmatprep.subr.mxu0 0.0
    %976 = vmatpush1.msra.mxu0 0.0
    %977 = vmatprep.subr.mxu0 0.0
    %978 = vmatpush1.msra.mxu0 0.0
    %979 = vmatprep.subr.mxu0 0.0
    %980 = vmatpush1.msra.mxu0 0.0
    %981 = vmatprep.subr.mxu0 0.0
    %982 = vmatpush1.msra.mxu0 0.0
    %983 = vmatprep.subr.mxu0 0.0
    %984 = vmatpush1.msra.mxu0 0.0
    %985 = vmatprep.subr.mxu0 0.0
    %986 = vmatpush1.msra.mxu0 0.0
    %987 = vmatprep.subr.mxu0 0.0
    %988 = vmatpush1.msra.mxu0 0.0
    %989 = vmatprep.subr.mxu0 0.0
    %990 = vmatpush1.msra.mxu0 0.0
    %991 = vmatprep.subr.mxu0 0.0
    %992 = vmatpush1.msra.mxu0 0.0
    %993 = vmatprep.subr.mxu0 0.0
    %994 = vmatpush1.msra.mxu0 0.0
    %995 = vmatprep.subr.mxu0 0.0
    %996 = vmatpush1.msra.mxu0 0.0
    %997 = vmatprep.subr.mxu0 0.0
    %998 = vmatpush1.msra.mxu0 0.0
    %999 = vmatprep.subr.mxu0 0.0
    %1000 = vmatpush1.msra.mxu0 0.0
    %1001 = vmatprep.mubr.f32.mxu0 0.0
    %1002 = vmatmul.mubr.f32.gmra.mrb[0].mxu0 %v935
    %v1003 = vpop.f32.mrb[0].mxu0
    %v1004 = vadd.f32 0.0, %v1003
    %v1005 = vpop.f32.mrb[0].mxu0
    %1006 = vdwg.mxu0
    %v1008 = vsel %vm75, %v775, 0
    %1010 = vmatprep.subr.mxu0 0.0
    %1011 = vmatpush1.msra.mxu0 %v783
    %1012 = vmatprep.subr.mxu0 0.0
    %1013 = vmatpush1.msra.mxu0 0.0
    %1014 = vmatprep.subr.mxu0 0.0
    %1015 = vmatpush1.msra.mxu0 0.0
    %1016 = vmatprep.subr.mxu0 0.0
    %1017 = vmatpush1.msra.mxu0 0.0
    %1018 = vmatprep.subr.mxu0 0.0
    %1019 = vmatpush1.msra.mxu0 0.0
    %1020 = vmatprep.subr.mxu0 0.0
    %1021 = vmatpush1.msra.mxu0 0.0
    %1022 = vmatprep.subr.mxu0 0.0
    %1023 = vmatpush1.msra.mxu0 0.0
    %1024 = vmatprep.subr.mxu0 0.0
    %1025 = vmatpush1.msra.mxu0 0.0
    %1026 = vmatprep.subr.mxu0 0.0
    %1027 = vmatpush1.msra.mxu0 0.0
    %1028 = vmatprep.subr.mxu0 0.0
    %1029 = vmatpush1.msra.mxu0 0.0
    %1030 = vmatprep.subr.mxu0 0.0
    %1031 = vmatpush1.msra.mxu0 0.0
    %1032 = vmatprep.subr.mxu0 0.0
    %1033 = vmatpush1.msra.mxu0 0.0
    %1034 = vmatprep.subr.mxu0 0.0
    %1035 = vmatpush1.msra.mxu0 0.0
    %1036 = vmatprep.subr.mxu0 0.0
    %1037 = vmatpush1.msra.mxu0 0.0
    %1038 = vmatprep.subr.mxu0 0.0
    %1039 = vmatpush1.msra.mxu0 0.0
    %1040 = vmatprep.subr.mxu0 0.0
    %1041 = vmatpush1.msra.mxu0 0.0
    %1042 = vmatprep.subr.mxu0 0.0
    %1043 = vmatpush1.msra.mxu0 0.0
    %1044 = vmatprep.subr.mxu0 0.0
    %1045 = vmatpush1.msra.mxu0 0.0
    %1046 = vmatprep.subr.mxu0 0.0
    %1047 = vmatpush1.msra.mxu0 0.0
    %1048 = vmatprep.subr.mxu0 0.0
    %1049 = vmatpush1.msra.mxu0 0.0
    %1050 = vmatprep.subr.mxu0 0.0
    %1051 = vmatpush1.msra.mxu0 0.0
    %1052 = vmatprep.subr.mxu0 0.0
    %1053 = vmatpush1.msra.mxu0 0.0
    %1054 = vmatprep.subr.mxu0 0.0
    %1055 = vmatpush1.msra.mxu0 0.0
    %1056 = vmatprep.subr.mxu0 0.0
    %1057 = vmatpush1.msra.mxu0 0.0
    %1058 = vmatprep.subr.mxu0 0.0
    %1059 = vmatpush1.msra.mxu0 0.0
    %1060 = vmatprep.subr.mxu0 0.0
    %1061 = vmatpush1.msra.mxu0 0.0
    %1062 = vmatprep.subr.mxu0 0.0
    %1063 = vmatpush1.msra.mxu0 0.0
    %1064 = vmatprep.subr.mxu0 0.0
    %1065 = vmatpush1.msra.mxu0 0.0
    %1066 = vmatprep.subr.mxu0 0.0
    %1067 = vmatpush1.msra.mxu0 0.0
    %1068 = vmatprep.subr.mxu0 0.0
    %1069 = vmatpush1.msra.mxu0 0.0
    %1070 = vmatprep.subr.mxu0 0.0
    %1071 = vmatpush1.msra.mxu0 0.0
    %1072 = vmatprep.subr.mxu0 0.0
    %1073 = vmatpush1.msra.mxu0 0.0
    %1074 = vmatprep.mubr.f32.mxu0 0.0
    %1075 = vmatmul.mubr.f32.gmra.mrb[0].mxu0 %v1008
    %v1076 = vpop.f32.mrb[0].mxu0
    %v1077 = vadd.f32 0.0, %v1076
    %v1078 = vpop.f32.mrb[0].mxu0
    %1079 = vdwg.mxu0
    %v1081 = vsel %vm75, %v776, 0
    %1083 = vmatprep.subr.mxu0 0.0
    %1084 = vmatpush1.msra.mxu0 %v784
    %1085 = vmatprep.subr.mxu0 0.0
    %1086 = vmatpush1.msra.mxu0 0.0
    %1087 = vmatprep.subr.mxu0 0.0
    %1088 = vmatpush1.msra.mxu0 0.0
    %1089 = vmatprep.subr.mxu0 0.0
    %1090 = vmatpush1.msra.mxu0 0.0
    %1091 = vmatprep.subr.mxu0 0.0
    %1092 = vmatpush1.msra.mxu0 0.0
    %1093 = vmatprep.subr.mxu0 0.0
    %1094 = vmatpush1.msra.mxu0 0.0
    %1095 = vmatprep.subr.mxu0 0.0
    %1096 = vmatpush1.msra.mxu0 0.0
    %1097 = vmatprep.subr.mxu0 0.0
    %1098 = vmatpush1.msra.mxu0 0.0
    %1099 = vmatprep.subr.mxu0 0.0
    %1100 = vmatpush1.msra.mxu0 0.0
    %1101 = vmatprep.subr.mxu0 0.0
    %1102 = vmatpush1.msra.mxu0 0.0
    %1103 = vmatprep.subr.mxu0 0.0
    %1104 = vmatpush1.msra.mxu0 0.0
    %1105 = vmatprep.subr.mxu0 0.0
    %1106 = vmatpush1.msra.mxu0 0.0
    %1107 = vmatprep.subr.mxu0 0.0
    %1108 = vmatpush1.msra.mxu0 0.0
    %1109 = vmatprep.subr.mxu0 0.0
    %1110 = vmatpush1.msra.mxu0 0.0
    %1111 = vmatprep.subr.mxu0 0.0
    %1112 = vmatpush1.msra.mxu0 0.0
    %1113 = vmatprep.subr.mxu0 0.0
    %1114 = vmatpush1.msra.mxu0 0.0
    %1115 = vmatprep.subr.mxu0 0.0
    %1116 = vmatpush1.msra.mxu0 0.0
    %1117 = vmatprep.subr.mxu0 0.0
    %1118 = vmatpush1.msra.mxu0 0.0
    %1119 = vmatprep.subr.mxu0 0.0
    %1120 = vmatpush1.msra.mxu0 0.0
    %1121 = vmatprep.subr.mxu0 0.0
    %1122 = vmatpush1.msra.mxu0 0.0
    %1123 = vmatprep.subr.mxu0 0.0
    %1124 = vmatpush1.msra.mxu0 0.0
    %1125 = vmatprep.subr.mxu0 0.0
    %1126 = vmatpush1.msra.mxu0 0.0
    %1127 = vmatprep.subr.mxu0 0.0
    %1128 = vmatpush1.msra.mxu0 0.0
    %1129 = vmatprep.subr.mxu0 0.0
    %1130 = vmatpush1.msra.mxu0 0.0
    %1131 = vmatprep.subr.mxu0 0.0
    %1132 = vmatpush1.msra.mxu0 0.0
    %1133 = vmatprep.subr.mxu0 0.0
    %1134 = vmatpush1.msra.mxu0 0.0
    %1135 = vmatprep.subr.mxu0 0.0
    %1136 = vmatpush1.msra.mxu0 0.0
    %1137 = vmatprep.subr.mxu0 0.0
    %1138 = vmatpush1.msra.mxu0 0.0
    %1139 = vmatprep.subr.mxu0 0.0
    %1140 = vmatpush1.msra.mxu0 0.0
    %1141 = vmatprep.subr.mxu0 0.0
    %1142 = vmatpush1.msra.mxu0 0.0
    %1143 = vmatprep.subr.mxu0 0.0
    %1144 = vmatpush1.msra.mxu0 0.0
    %1145 = vmatprep.subr.mxu0 0.0
    %1146 = vmatpush1.msra.mxu0 0.0
    %1147 = vmatprep.mubr.f32.mxu0 0.0
    %1148 = vmatmul.mubr.f32.gmra.mrb[0].mxu0 %v1081
    %v1149 = vpop.f32.mrb[0].mxu0
    %v1150 = vadd.f32 0.0, %v1149
    %v1151 = vpop.f32.mrb[0].mxu0
    %1152 = vdwg.mxu0
    %v1154 = vsel %vm75, %v777, 0
    %1156 = vmatprep.subr.mxu0 0.0
    %1157 = vmatpush1.msra.mxu0 %v785
    %1158 = vmatprep.subr.mxu0 0.0
    %1159 = vmatpush1.msra.mxu0 0.0
    %1160 = vmatprep.subr.mxu0 0.0
    %1161 = vmatpush1.msra.mxu0 0.0
    %1162 = vmatprep.subr.mxu0 0.0
    %1163 = vmatpush1.msra.mxu0 0.0
    %1164 = vmatprep.subr.mxu0 0.0
    %1165 = vmatpush1.msra.mxu0 0.0
    %1166 = vmatprep.subr.mxu0 0.0
    %1167 = vmatpush1.msra.mxu0 0.0
    %1168 = vmatprep.subr.mxu0 0.0
    %1169 = vmatpush1.msra.mxu0 0.0
    %1170 = vmatprep.subr.mxu0 0.0
    %1171 = vmatpush1.msra.mxu0 0.0
    %1172 = vmatprep.subr.mxu0 0.0
    %1173 = vmatpush1.msra.mxu0 0.0
    %1174 = vmatprep.subr.mxu0 0.0
    %1175 = vmatpush1.msra.mxu0 0.0
    %1176 = vmatprep.subr.mxu0 0.0
    %1177 = vmatpush1.msra.mxu0 0.0
    %1178 = vmatprep.subr.mxu0 0.0
    %1179 = vmatpush1.msra.mxu0 0.0
    %1180 = vmatprep.subr.mxu0 0.0
    %1181 = vmatpush1.msra.mxu0 0.0
    %1182 = vmatprep.subr.mxu0 0.0
    %1183 = vmatpush1.msra.mxu0 0.0
    %1184 = vmatprep.subr.mxu0 0.0
    %1185 = vmatpush1.msra.mxu0 0.0
    %1186 = vmatprep.subr.mxu0 0.0
    %1187 = vmatpush1.msra.mxu0 0.0
    %1188 = vmatprep.subr.mxu0 0.0
    %1189 = vmatpush1.msra.mxu0 0.0
    %1190 = vmatprep.subr.mxu0 0.0
    %1191 = vmatpush1.msra.mxu0 0.0
    %1192 = vmatprep.subr.mxu0 0.0
    %1193 = vmatpush1.msra.mxu0 0.0
    %1194 = vmatprep.subr.mxu0 0.0
    %1195 = vmatpush1.msra.mxu0 0.0
    %1196 = vmatprep.subr.mxu0 0.0
    %1197 = vmatpush1.msra.mxu0 0.0
    %1198 = vmatprep.subr.mxu0 0.0
    %1199 = vmatpush1.msra.mxu0 0.0
    %1200 = vmatprep.subr.mxu0 0.0
    %1201 = vmatpush1.msra.mxu0 0.0
    %1202 = vmatprep.subr.mxu0 0.0
    %1203 = vmatpush1.msra.mxu0 0.0
    %1204 = vmatprep.subr.mxu0 0.0
    %1205 = vmatpush1.msra.mxu0 0.0
    %1206 = vmatprep.subr.mxu0 0.0
    %1207 = vmatpush1.msra.mxu0 0.0
    %1208 = vmatprep.subr.mxu0 0.0
    %1209 = vmatpush1.msra.mxu0 0.0
    %1210 = vmatprep.subr.mxu0 0.0
    %1211 = vmatpush1.msra.mxu0 0.0
    %1212 = vmatprep.subr.mxu0 0.0
    %1213 = vmatpush1.msra.mxu0 0.0
    %1214 = vmatprep.subr.mxu0 0.0
    %1215 = vmatpush1.msra.mxu0 0.0
    %1216 = vmatprep.subr.mxu0 0.0
    %1217 = vmatpush1.msra.mxu0 0.0
    %1218 = vmatprep.subr.mxu0 0.0
    %1219 = vmatpush1.msra.mxu0 0.0
    %1220 = vmatprep.mubr.f32.mxu0 0.0
    %1221 = vmatmul.mubr.f32.gmra.mrb[0].mxu0 %v1154
    %v1222 = vpop.f32.mrb[0].mxu0
    %v1223 = vadd.f32 0.0, %v1222
    %v1224 = vpop.f32.mrb[0].mxu0
    %1225 = vdwg.mxu0
    %v1227 = vsel %vm75, %v778, 0
    %1229 = vmatprep.subr.mxu0 0.0
    %1230 = vmatpush1.msra.mxu0 %v786
    %1231 = vmatprep.subr.mxu0 0.0
    %1232 = vmatpush1.msra.mxu0 0.0
    %1233 = vmatprep.subr.mxu0 0.0
    %1234 = vmatpush1.msra.mxu0 0.0
    %1235 = vmatprep.subr.mxu0 0.0
    %1236 = vmatpush1.msra.mxu0 0.0
    %1237 = vmatprep.subr.mxu0 0.0
    %1238 = vmatpush1.msra.mxu0 0.0
    %1239 = vmatprep.subr.mxu0 0.0
    %1240 = vmatpush1.msra.mxu0 0.0
    %1241 = vmatprep.subr.mxu0 0.0
    %1242 = vmatpush1.msra.mxu0 0.0
    %1243 = vmatprep.subr.mxu0 0.0
    %1244 = vmatpush1.msra.mxu0 0.0
    %1245 = vmatprep.subr.mxu0 0.0
    %1246 = vmatpush1.msra.mxu0 0.0
    %1247 = vmatprep.subr.mxu0 0.0
    %1248 = vmatpush1.msra.mxu0 0.0
    %1249 = vmatprep.subr.mxu0 0.0
    %1250 = vmatpush1.msra.mxu0 0.0
    %1251 = vmatprep.subr.mxu0 0.0
    %1252 = vmatpush1.msra.mxu0 0.0
    %1253 = vmatprep.subr.mxu0 0.0
    %1254 = vmatpush1.msra.mxu0 0.0
    %1255 = vmatprep.subr.mxu0 0.0
    %1256 = vmatpush1.msra.mxu0 0.0
    %1257 = vmatprep.subr.mxu0 0.0
    %1258 = vmatpush1.msra.mxu0 0.0
    %1259 = vmatprep.subr.mxu0 0.0
    %1260 = vmatpush1.msra.mxu0 0.0
    %1261 = vmatprep.subr.mxu0 0.0
    %1262 = vmatpush1.msra.mxu0 0.0
    %1263 = vmatprep.subr.mxu0 0.0
    %1264 = vmatpush1.msra.mxu0 0.0
    %1265 = vmatprep.subr.mxu0 0.0
    %1266 = vmatpush1.msra.mxu0 0.0
    %1267 = vmatprep.subr.mxu0 0.0
    %1268 = vmatpush1.msra.mxu0 0.0
    %1269 = vmatprep.subr.mxu0 0.0
    %1270 = vmatpush1.msra.mxu0 0.0
    %1271 = vmatprep.subr.mxu0 0.0
    %1272 = vmatpush1.msra.mxu0 0.0
    %1273 = vmatprep.subr.mxu0 0.0
    %1274 = vmatpush1.msra.mxu0 0.0
    %1275 = vmatprep.subr.mxu0 0.0
    %1276 = vmatpush1.msra.mxu0 0.0
    %1277 = vmatprep.subr.mxu0 0.0
    %1278 = vmatpush1.msra.mxu0 0.0
    %1279 = vmatprep.subr.mxu0 0.0
    %1280 = vmatpush1.msra.mxu0 0.0
    %1281 = vmatprep.subr.mxu0 0.0
    %1282 = vmatpush1.msra.mxu0 0.0
    %1283 = vmatprep.subr.mxu0 0.0
    %1284 = vmatpush1.msra.mxu0 0.0
    %1285 = vmatprep.subr.mxu0 0.0
    %1286 = vmatpush1.msra.mxu0 0.0
    %1287 = vmatprep.subr.mxu0 0.0
    %1288 = vmatpush1.msra.mxu0 0.0
    %1289 = vmatprep.subr.mxu0 0.0
    %1290 = vmatpush1.msra.mxu0 0.0
    %1291 = vmatprep.subr.mxu0 0.0
    %1292 = vmatpush1.msra.mxu0 0.0
    %1293 = vmatprep.mubr.f32.mxu0 0.0
    %1294 = vmatmul.mubr.f32.gmra.mrb[0].mxu0 %v1227
    %v1295 = vpop.f32.mrb[0].mxu0
    %v1296 = vadd.f32 0.0, %v1295
    %v1297 = vpop.f32.mrb[0].mxu0
    %1298 = vdwg.mxu0
    %v1300 = vsel %vm75, %v779, 0
    %1302 = vmatprep.subr.mxu0 0.0
    %1303 = vmatpush1.msra.mxu0 %v787
    %1304 = vmatprep.subr.mxu0 0.0
    %1305 = vmatpush1.msra.mxu0 0.0
    %1306 = vmatprep.subr.mxu0 0.0
    %1307 = vmatpush1.msra.mxu0 0.0
    %1308 = vmatprep.subr.mxu0 0.0
    %1309 = vmatpush1.msra.mxu0 0.0
    %1310 = vmatprep.subr.mxu0 0.0
    %1311 = vmatpush1.msra.mxu0 0.0
    %1312 = vmatprep.subr.mxu0 0.0
    %1313 = vmatpush1.msra.mxu0 0.0
    %1314 = vmatprep.subr.mxu0 0.0
    %1315 = vmatpush1.msra.mxu0 0.0
    %1316 = vmatprep.subr.mxu0 0.0
    %1317 = vmatpush1.msra.mxu0 0.0
    %1318 = vmatprep.subr.mxu0 0.0
    %1319 = vmatpush1.msra.mxu0 0.0
    %1320 = vmatprep.subr.mxu0 0.0
    %1321 = vmatpush1.msra.mxu0 0.0
    %1322 = vmatprep.subr.mxu0 0.0
    %1323 = vmatpush1.msra.mxu0 0.0
    %1324 = vmatprep.subr.mxu0 0.0
    %1325 = vmatpush1.msra.mxu0 0.0
    %1326 = vmatprep.subr.mxu0 0.0
    %1327 = vmatpush1.msra.mxu0 0.0
    %1328 = vmatprep.subr.mxu0 0.0
    %1329 = vmatpush1.msra.mxu0 0.0
    %1330 = vmatprep.subr.mxu0 0.0
    %1331 = vmatpush1.msra.mxu0 0.0
    %1332 = vmatprep.subr.mxu0 0.0
    %1333 = vmatpush1.msra.mxu0 0.0
    %1334 = vmatprep.subr.mxu0 0.0
    %1335 = vmatpush1.msra.mxu0 0.0
    %1336 = vmatprep.subr.mxu0 0.0
    %1337 = vmatpush1.msra.mxu0 0.0
    %1338 = vmatprep.subr.mxu0 0.0
    %1339 = vmatpush1.msra.mxu0 0.0
    %1340 = vmatprep.subr.mxu0 0.0
    %1341 = vmatpush1.msra.mxu0 0.0
    %1342 = vmatprep.subr.mxu0 0.0
    %1343 = vmatpush1.msra.mxu0 0.0
    %1344 = vmatprep.subr.mxu0 0.0
    %1345 = vmatpush1.msra.mxu0 0.0
    %1346 = vmatprep.subr.mxu0 0.0
    %1347 = vmatpush1.msra.mxu0 0.0
    %1348 = vmatprep.subr.mxu0 0.0
    %1349 = vmatpush1.msra.mxu0 0.0
    %1350 = vmatprep.subr.mxu0 0.0
    %1351 = vmatpush1.msra.mxu0 0.0
    %1352 = vmatprep.subr.mxu0 0.0
    %1353 = vmatpush1.msra.mxu0 0.0
    %1354 = vmatprep.subr.mxu0 0.0
    %1355 = vmatpush1.msra.mxu0 0.0
    %1356 = vmatprep.subr.mxu0 0.0
    %1357 = vmatpush1.msra.mxu0 0.0
    %1358 = vmatprep.subr.mxu0 0.0
    %1359 = vmatpush1.msra.mxu0 0.0
    %1360 = vmatprep.subr.mxu0 0.0
    %1361 = vmatpush1.msra.mxu0 0.0
    %1362 = vmatprep.subr.mxu0 0.0
    %1363 = vmatpush1.msra.mxu0 0.0
    %1364 = vmatprep.subr.mxu0 0.0
    %1365 = vmatpush1.msra.mxu0 0.0
    %1366 = vmatprep.mubr.f32.mxu0 0.0
    %1367 = vmatmul.mubr.f32.gmra.mrb[0].mxu0 %v1300
    %v1368 = vpop.f32.mrb[0].mxu0
    %v1369 = vadd.f32 0.0, %v1368
    %v1370 = vpop.f32.mrb[0].mxu0
    %1371 = vdwg.mxu0
    %1372 = vst.msk [vmem:[#allocation8] sm:$0xff] %vm75, %v858
    %1373 = vst.msk [vmem:[#allocation8 + $0x8] sm:$0xff] %vm75, %v931
    %1374 = vst.msk [vmem:[#allocation8 + $0x10] sm:$0xff] %vm75, %v1004
    %1375 = vst.msk [vmem:[#allocation8 + $0x18] sm:$0xff] %vm75, %v1077
    %1376 = vst.msk [vmem:[#allocation8 + $0x20] sm:$0xff] %vm75, %v1150
    %1377 = vst.msk [vmem:[#allocation8 + $0x28] sm:$0xff] %vm75, %v1223
    %1378 = vst.msk [vmem:[#allocation8 + $0x30] sm:$0xff] %vm75, %v1296
    %1379 = vst.msk [vmem:[#allocation8 + $0x38] sm:$0xff] %vm75, %v1369
    %1380 = vst.msk [vmem:[#allocation9] sm:$0xff] %vm75, %v772
    %1381 = vst.msk [vmem:[#allocation9 + $0x8] sm:$0xff] %vm75, %v773
    %1382 = vst.msk [vmem:[#allocation9 + $0x10] sm:$0xff] %vm75, %v774
    %1383 = vst.msk [vmem:[#allocation9 + $0x18] sm:$0xff] %vm75, %v775
    %1384 = vst.msk [vmem:[#allocation9 + $0x20] sm:$0xff] %vm75, %v776
    %1385 = vst.msk [vmem:[#allocation9 + $0x28] sm:$0xff] %vm75, %v777
    %1386 = vst.msk [vmem:[#allocation9 + $0x30] sm:$0xff] %vm75, %v778
    %1387 = vst.msk [vmem:[#allocation9 + $0x38] sm:$0xff] %vm75, %v779
    // Predicated region
    $region26: #{tpu_custom_call.1} parent=1 // pred_check
      _
    $region27: #{tpu_custom_call.1} parent=1 // pred_check_branch
      %1389 = sbr.rel (0) target = $region29
    $region28: #{tpu_custom_call.1} parent=1 // pred_region
      %s1391 = ssub.s32 1024, 1024
      %1392 = vsyncadd [#allocation4], %s1391
      %s1393 = sshll.u32 [#allocation8], 4
      %s1394 = int_to_ptr.vmem [resolvable:$true] %s1393
      %1399 = dma.vmem_to_hbm [thread:$0]  %s1394, 1024, %s3, [#allocation4], 128, 128, 8
    $region29: #{tpu_custom_call.1} parent=1 // pred_fallthru
      _
    // Predicated region
    $region30: #{tpu_custom_call.1} parent=1 // pred_check
      _
    $region31: #{tpu_custom_call.1} parent=1 // pred_check_branch
      %1401 = sbr.rel (0) target = $region33
    $region32: #{tpu_custom_call.1} parent=1 // pred_region
      %s1403 = ssub.s32 1024, 1024
      %1404 = vsyncadd [#allocation10], %s1403
      %s1405 = sshll.u32 [#allocation9], 4
      %s1406 = int_to_ptr.vmem [resolvable:$true] %s1405
      %1411 = dma.vmem_to_hbm [thread:$0]  %s1406, 1024, %s4, [#allocation10], 128, 128, 8
    $region33: #{tpu_custom_call.1} parent=1 // pred_fallthru
      _
    // Predicated region
    $region34: #{tpu_custom_call.1} parent=1 // pred_check
      _
    $region35: #{tpu_custom_call.1} parent=1 // pred_check_branch
      %1413 = sbr.rel (0) target = $region37
    $region36: #{tpu_custom_call.1} parent=1 // pred_region
      %1414 = dma.done [#allocation4], 1024
    $region37: #{tpu_custom_call.1} parent=1 // pred_fallthru
      _
    // Predicated region
    $region38: #{tpu_custom_call.1} parent=1 // pred_check
      _
    $region39: #{tpu_custom_call.1} parent=1 // pred_check_branch
      %1416 = sbr.rel (0) target = $region41
    $region40: #{tpu_custom_call.1} parent=1 // pred_region
      %1417 = dma.done [#allocation10], 1024
    $region41: #{tpu_custom_call.1} parent=1 // pred_fallthru
      _
    %1418 = vsyncpa [#allocation3], 1
    %1419 = vsyncpa [#allocation6], 1
    %1420 = vsyncpa [#allocation4], 1
    %1421 = vsyncpa [#allocation10], 1

</llo_original>
